<compile_context>
chip_gen: v7x
topology: tpu7x:2x2x1
jax: 0.10.0
libtpu: 0.0.40
codegen_flags: <defaults>
</compile_context>

<pallas_src>
import jax
import jax.numpy as jnp
from jax import lax
from jax.experimental import pallas as pl
from jax.experimental.pallas import tpu as pltpu

BN_EPS = 1e-5


# ----------------------------- small helpers --------------------------------

def _round_up(x, m):
    return (x + m - 1) // m * m


def _vmem_block_bytes(shape, dtype):
    """Approximate VMEM footprint of one block (last two dims padded to (8,128))."""
    shape = tuple(shape)
    lead = 1
    for d in shape[:-2]:
        lead *= d
    rows = _round_up(shape[-2], 8)
    cols = _round_up(shape[-1], 128)
    return lead * rows * cols * jnp.dtype(dtype).itemsize


def _vmem_limit_bytes(blocks):
    """Explicit scoped-VMEM budget: 2x (double-buffer) per-step blocks + headroom."""
    total = 2 * sum(_vmem_block_bytes(s, d) for s, d in blocks)
    return int(min(64 * 1024 * 1024, max(16 * 1024 * 1024, 2 * total)))


def _choose_tm(m):
    return min(512, _round_up(m, 8))


# ----------------------------- Pallas kernels -------------------------------

def _pooled_conv_block(p00_ref, p01_ref, p10_ref, p11_ref, w_ref, b_ref):
    """Four pool-member matmuls -> max -> +bias -> ReLU, all in f32."""
    w = w_ref[...]
    z = jnp.maximum(
        jnp.maximum(jnp.dot(p00_ref[...], w, preferred_element_type=jnp.float32),
                    jnp.dot(p01_ref[...], w, preferred_element_type=jnp.float32)),
        jnp.maximum(jnp.dot(p10_ref[...], w, preferred_element_type=jnp.float32),
                    jnp.dot(p11_ref[...], w, preferred_element_type=jnp.float32)))
    # bias is constant across the 2x2 window and ReLU is monotone, so
    # max(relu(z+b)) == relu(max(z)+b): identical numerics, fewer VPU ops.
    return jnp.maximum(z + b_ref[...], 0.0)


def _conv_pool_kernel(p00_ref, p01_ref, p10_ref, p11_ref, w_ref, b_ref, o_ref):
    o_ref[...] = _pooled_conv_block(
        p00_ref, p01_ref, p10_ref, p11_ref, w_ref, b_ref).astype(o_ref.dtype)


def _conv_pool_skip_kernel(p00_ref, p01_ref, p10_ref, p11_ref,
                           w_ref, b_ref, skip_ref, o_ref):
    z = _pooled_conv_block(p00_ref, p01_ref, p10_ref, p11_ref, w_ref, b_ref)
    o_ref[...] = (z + skip_ref[...]).astype(o_ref.dtype)


def _matmul_kernel(p_ref, w_ref, o_ref):
    o_ref[...] = jnp.dot(p_ref[...], w_ref[...],
                         preferred_element_type=jnp.float32).astype(o_ref.dtype)


# ----------------------------- wrappers --------------------------------------

def fused_conv_bn_relu_pool(x_nhwc, w_oihw, scale, bias, *, padding, skip=None):
    """Conv2d(k, stride=1, pad) + per-channel affine + ReLU + MaxPool2d(2,2)
    (+ optional residual add) as one tiled Pallas kernel.  NHWC in/out."""
    B, H, W, Cin = x_nhwc.shape
    Cout, _, kh, kw = w_oihw.shape
    xp = jnp.pad(x_nhwc, ((0, 0), (padding, padding), (padding, padding), (0, 0)))
    Hp, Wp = H + 2 * padding, W + 2 * padding
    Ho, Wo = Hp - kh + 1, Wp - kw + 1          # conv output (stride 1)
    Hpo, Wpo = Ho // 2, Wo // 2                 # pooled output (truncating)
    K = kh * kw * Cin
    M = B * Hpo * Wpo

    # Four pool-member im2col slabs, one per (r, c) in the 2x2 pool window:
    # slab_{rc}[b*Hpo*Wpo + p*Wpo + q, (i*kw + j)*Cin + :] = xp[b, 2p+r+i, 2q+c+j, :]
    slabs = []
    for r in range(2):
        for c in range(2):
            taps = [xp[:, r + i: r + i + 2 * Hpo: 2,
                       c + j: c + j + 2 * Wpo: 2, :]
                    for i in range(kh) for j in range(kw)]
            slabs.append(jnp.concatenate(taps, axis=-1)
                         .reshape(M, K).astype(jnp.bfloat16))

    # Weight (Cout, Cin, kh, kw) -> (kh*kw*Cin, Cout) with BN scale folded in.
    wmat = jnp.transpose(w_oihw, (2, 3, 1, 0)).reshape(K, Cout).astype(jnp.float32)
    wmat = (wmat * scale.reshape(1, Cout).astype(jnp.float32)).astype(jnp.bfloat16)
    brow = bias.reshape(1, Cout).astype(jnp.float32)

    TM = _choose_tm(M)
    Mp = _round_up(M, TM)
    if Mp != M:
        slabs = [jnp.pad(s, ((0, Mp - M), (0, 0))) for s in slabs]

    inputs = list(slabs) + [wmat, brow]
    in_specs = ([pl.BlockSpec((TM, K), lambda i: (i, 0))] * 4
                + [pl.BlockSpec((K, Cout), lambda i: (0, 0)),
                   pl.BlockSpec((1, Cout), lambda i: (0, 0))])
    blocks = ([((TM, K), jnp.bfloat16)] * 4
              + [((K, Cout), jnp.bfloat16), ((1, Cout), jnp.float32),
                 ((TM, Cout), jnp.float32)])           # output block

    if skip is not None:
        assert skip.shape == (B, Hpo, Wpo, Cout), (skip.shape, (B, Hpo, Wpo, Cout))
        skip2 = skip.reshape(M, Cout).astype(jnp.float32)
        if Mp != M:
            skip2 = jnp.pad(skip2, ((0, Mp - M), (0, 0)))
        inputs.append(skip2)
        in_specs.append(pl.BlockSpec((TM, Cout), lambda i: (i, 0)))
        blocks.append(((TM, Cout), jnp.float32))
        kernel = _conv_pool_skip_kernel
    else:
        kernel = _conv_pool_kernel

    out = pl.pallas_call(
        kernel,
        out_shape=jax.ShapeDtypeStruct((Mp, Cout), jnp.float32),
        grid_spec=pl.GridSpec(
            grid=(Mp // TM,),
            in_specs=in_specs,
            out_specs=pl.BlockSpec((TM, Cout), lambda i: (i, 0)),
        ),
        compiler_params=pltpu.CompilerParams(
            dimension_semantics=("parallel",),
            vmem_limit_bytes=_vmem_limit_bytes(blocks)),
    )(*inputs)
    return out[:M].reshape(B, Hpo, Wpo, Cout)


def conv2d_matmul(x_nhwc, w_oihw, *, stride, padding):
    """Plain Conv2d (no bias / BN / act) via im2col + tiled Pallas matmul."""
    B, H, W, Cin = x_nhwc.shape
    Cout, _, kh, kw = w_oihw.shape
    xp = x_nhwc
    if padding:
        xp = jnp.pad(x_nhwc, ((0, 0), (padding, padding), (padding, padding), (0, 0)))
    Hp, Wp = H + 2 * padding, W + 2 * padding
    Ho = (Hp - kh) // stride + 1
    Wo = (Wp - kw) // stride + 1
    K = kh * kw * Cin
    M = B * Ho * Wo

    taps = [xp[:, i: i + stride * (Ho - 1) + 1: stride,
               j: j + stride * (Wo - 1) + 1: stride, :]
            for i in range(kh) for j in range(kw)]
    patches = jnp.concatenate(taps, axis=-1).reshape(M, K).astype(jnp.bfloat16)
    wmat = jnp.transpose(w_oihw, (2, 3, 1, 0)).reshape(K, Cout).astype(jnp.bfloat16)

    TM = _choose_tm(M)
    Mp = _round_up(M, TM)
    if Mp != M:
        patches = jnp.pad(patches, ((0, Mp - M), (0, 0)))

    blocks = [((TM, K), jnp.bfloat16), ((K, Cout), jnp.bfloat16),
              ((TM, Cout), jnp.float32)]
    out = pl.pallas_call(
        _matmul_kernel,
        out_shape=jax.ShapeDtypeStruct((Mp, Cout), jnp.float32),
        grid_spec=pl.GridSpec(
            grid=(Mp // TM,),
            in_specs=[pl.BlockSpec((TM, K), lambda i: (i, 0)),
                      pl.BlockSpec((K, Cout), lambda i: (0, 0))],
            out_specs=pl.BlockSpec((TM, Cout), lambda i: (i, 0)),
        ),
        compiler_params=pltpu.CompilerParams(
            dimension_semantics=("parallel",),
            vmem_limit_bytes=_vmem_limit_bytes(blocks)),
    )(patches, wmat)
    return out[:M].reshape(B, Ho, Wo, Cout)


# ----------------------------- ConvStem forward ------------------------------

def conv_stem_forward(x_nchw, params):
    """Pallas ConvStem forward. Input/output in NCHW (PyTorch convention)."""
    x = jnp.transpose(x_nchw, (0, 2, 3, 1))  # -> NHWC

    # eval-mode BatchNorm folded into per-channel scale/bias
    # TODO(synk): training-mode BatchNorm (batch-stat computation + running-stat
    #             update) is not implemented; eval-mode affine semantics used.
    s1 = params["bn1_gamma"] * lax.rsqrt(params["bn1_var"] + BN_EPS)
    b1 = params["bn1_beta"] - params["bn1_mean"] * s1
    s2 = params["bn2_gamma"] * lax.rsqrt(params["bn2_var"] + BN_EPS)
    b2 = params["bn2_beta"] - params["bn2_mean"] * s2

    # stage 1: conv1 + bn1 + relu + pool1   (single fused kernel)
    out = fused_conv_bn_relu_pool(x, params["conv1_w"], s1, b1, padding=1)
    # skip branch: conv(stride=2) on the pooled stage-1 output
    skip = conv2d_matmul(out, params["skip_w"], stride=2, padding=0)
    # stage 2: conv2 + bn2 + relu + pool2 + skip-add   (single fused kernel)
    out = fused_conv_bn_relu_pool(out, params["conv2_w"], s2, b2, padding=1,
                                  skip=skip)
    return jnp.transpose(out, (0, 3, 1, 2))  # -> NCHW


# ----------------------------- pure-JAX reference ----------------------------

def reference_forward(x, params):
    def conv(x, w, stride, padding):
        return lax.conv_general_dilated(
            x, w, (stride, stride), [(padding, padding), (padding, padding)],
            dimension_numbers=("NCHW", "OIHW", "NCHW"))

    def bn(x, g, b, m, v):
        return ((x - m[None, :, None, None])
                / jnp.sqrt(v[None, :, None, None] + BN_EPS)
                * g[None, :, None, None] + b[None, :, None, None])

    def pool(x):
        return lax.reduce_window(x, -jnp.inf, lax.max,
                                 (1, 1, 2, 2), (1, 1, 2, 2), "VALID")

    out = conv(x, params["conv1_w"], 1, 1)
    out = jnp.maximum(bn(out, params["bn1_gamma"], params["bn1_beta"],
                         params["bn1_mean"], params["bn1_var"]), 0.0)
    out = pool(out)
    skip = conv(out, params["skip_w"], 2, 0)
    out = conv(out, params["conv2_w"], 1, 1)
    out = jnp.maximum(bn(out, params["bn2_gamma"], params["bn2_beta"],
                         params["bn2_mean"], params["bn2_var"]), 0.0)
    out = pool(out)
    return out + skip


# ----------------------------- main -------------------------------------------

if __name__ == "__main__":
    in_channels, hidden_dim = 3, 64
    half = hidden_dim // 2
    B, H, W = 2, 16, 16

    key = jax.random.PRNGKey(0)
    ks = jax.random.split(key, 10)

    params = {
        "conv1_w": 0.1 * jax.random.normal(ks[0], (half, in_channels, 2, 2), jnp.float32),
        "conv2_w": 0.1 * jax.random.normal(ks[1], (hidden_dim, half, 2, 2), jnp.float32),
        "skip_w":  0.1 * jax.random.normal(ks[2], (hidden_dim, half, 2, 2), jnp.float32),
        "bn1_gamma": 1.0 + 0.1 * jax.random.normal(ks[3], (half,), jnp.float32),
        "bn1_beta":  0.1 * jax.random.normal(ks[4], (half,), jnp.float32),
        "bn1_mean":  0.1 * jax.random.normal(ks[5], (half,), jnp.float32),
        "bn1_var":   0.5 + jnp.abs(jax.random.normal(ks[6], (half,), jnp.float32)),
        "bn2_gamma": 1.0 + 0.1 * jax.random.normal(ks[7], (hidden_dim,), jnp.float32),
        "bn2_beta":  0.1 * jax.random.normal(ks[8], (hidden_dim,), jnp.float32),
        "bn2_mean":  jnp.zeros((hidden_dim,), jnp.float32),
        "bn2_var":   jnp.ones((hidden_dim,), jnp.float32),
    }

    x = jax.random.normal(ks[9], (B, in_channels, H, W), jnp.float32)

    fwd = jax.jit(conv_stem_forward)
    out = jax.block_until_ready(fwd(x, params))
    assert out.shape == (B, hidden_dim, H // 4, W // 4), out.shape

    ref = jax.block_until_ready(reference_forward(x, params))
    max_err = float(jnp.max(jnp.abs(out - ref)))
    # bf16 MXU operands (f32 accumulation) vs the f32 reference -> looser tol.
    assert jnp.allclose(out, ref, atol=3e-2, rtol=3e-2), max_err

    print("KERNEL_OK")
</pallas_src>

<mosaic_0001>
module attributes {stable_mosaic.version = 11 : i64} {
  func.func @_conv_pool_kernel(%arg0: i32, %arg1: memref<128x12xbf16, #tpu.memory_space<vmem>>, %arg2: memref<128x12xbf16, #tpu.memory_space<vmem>>, %arg3: memref<128x12xbf16, #tpu.memory_space<vmem>>, %arg4: memref<128x12xbf16, #tpu.memory_space<vmem>>, %arg5: memref<12x32xbf16, #tpu.memory_space<vmem>>, %arg6: memref<1x32xf32, #tpu.memory_space<vmem>>, %arg7: memref<128x32xf32, #tpu.memory_space<vmem>>) attributes {dimension_semantics = [#tpu.dimension_semantics<parallel>], iteration_bounds = array<i64: 1>, scalar_prefetch = 0 : i64, scratch_operands = 0 : i64, tpu.core_type = #tpu.core_type<tc>, window_params = [{transform_indices = @transform_0, window_bounds = array<i64: 128, 12>}, {transform_indices = @transform_1, window_bounds = array<i64: 128, 12>}, {transform_indices = @transform_2, window_bounds = array<i64: 128, 12>}, {transform_indices = @transform_3, window_bounds = array<i64: 128, 12>}, {pipeline_mode = #tpu.pipeline_mode<synchronous>, transform_indices = @transform_4, window_bounds = array<i64: 12, 32>}, {pipeline_mode = #tpu.pipeline_mode<synchronous>, transform_indices = @transform_5, window_bounds = array<i64: 1, 32>}, {transform_indices = @transform_6, window_bounds = array<i64: 128, 32>}]} {
    %c0 = arith.constant 0 : index
    %c0_0 = arith.constant 0 : index
    %0 = vector.load %arg5[%c0, %c0_0] : memref<12x32xbf16, #tpu.memory_space<vmem>>, vector<12x32xbf16>
    %c0_1 = arith.constant 0 : index
    %c0_2 = arith.constant 0 : index
    %1 = vector.load %arg1[%c0_1, %c0_2] : memref<128x12xbf16, #tpu.memory_space<vmem>>, vector<128x12xbf16>
    %cst = arith.constant dense<0.000000e+00> : vector<128x32xf32>
    %2 = tpu.matmul %1, %0, %cst {dimension_numbers = #tpu.dot_dimension_numbers<[1], [0], [0], [1], [0, 0, 1, 1], [], []>} : vector<128x12xbf16>, vector<12x32xbf16>, vector<128x32xf32> -> vector<128x32xf32>
    %c0_3 = arith.constant 0 : index
    %c0_4 = arith.constant 0 : index
    %3 = vector.load %arg2[%c0_3, %c0_4] : memref<128x12xbf16, #tpu.memory_space<vmem>>, vector<128x12xbf16>
    %cst_5 = arith.constant dense<0.000000e+00> : vector<128x32xf32>
    %4 = tpu.matmul %3, %0, %cst_5 {dimension_numbers = #tpu.dot_dimension_numbers<[1], [0], [0], [1], [0, 0, 1, 1], [], []>} : vector<128x12xbf16>, vector<12x32xbf16>, vector<128x32xf32> -> vector<128x32xf32>
    %5 = arith.maximumf %2, %4 : vector<128x32xf32>
    %c0_6 = arith.constant 0 : index
    %c0_7 = arith.constant 0 : index
    %6 = vector.load %arg3[%c0_6, %c0_7] : memref<128x12xbf16, #tpu.memory_space<vmem>>, vector<128x12xbf16>
    %cst_8 = arith.constant dense<0.000000e+00> : vector<128x32xf32>
    %7 = tpu.matmul %6, %0, %cst_8 {dimension_numbers = #tpu.dot_dimension_numbers<[1], [0], [0], [1], [0, 0, 1, 1], [], []>} : vector<128x12xbf16>, vector<12x32xbf16>, vector<128x32xf32> -> vector<128x32xf32>
    %c0_9 = arith.constant 0 : index
    %c0_10 = arith.constant 0 : index
    %8 = vector.load %arg4[%c0_9, %c0_10] : memref<128x12xbf16, #tpu.memory_space<vmem>>, vector<128x12xbf16>
    %cst_11 = arith.constant dense<0.000000e+00> : vector<128x32xf32>
    %9 = tpu.matmul %8, %0, %cst_11 {dimension_numbers = #tpu.dot_dimension_numbers<[1], [0], [0], [1], [0, 0, 1, 1], [], []>} : vector<128x12xbf16>, vector<12x32xbf16>, vector<128x32xf32> -> vector<128x32xf32>
    %10 = arith.maximumf %7, %9 : vector<128x32xf32>
    %11 = arith.maximumf %5, %10 : vector<128x32xf32>
    %c0_12 = arith.constant 0 : index
    %c0_13 = arith.constant 0 : index
    %12 = vector.load %arg6[%c0_12, %c0_13] : memref<1x32xf32, #tpu.memory_space<vmem>>, vector<1x32xf32>
    %13 = vector.broadcast %12 : vector<1x32xf32> to vector<128x32xf32>
    %14 = arith.addf %11, %13 : vector<128x32xf32>
    %cst_14 = arith.constant 0.000000e+00 : f32
    %15 = vector.broadcast %cst_14 : f32 to vector<128x32xf32>
    %16 = arith.maximumf %14, %15 : vector<128x32xf32>
    %c0_15 = arith.constant 0 : index
    %c0_16 = arith.constant 0 : index
    %17 = vector.load %arg7[%c0_15, %c0_16] : memref<128x32xf32, #tpu.memory_space<vmem>>, vector<128x32xf32>
    tpu.vector_store %arg7[%c0_15, %c0_16], %16 {strides = array<i32>} : memref<128x32xf32, #tpu.memory_space<vmem>>, vector<128x32xf32>,
    return
  }
  func.func @transform_0(%arg0: i32) -> (i32, i32) {
    %c0_i32 = arith.constant 0 : i32
    %c0_i32_0 = arith.constant 0 : i32
    return %arg0, %c0_i32 : i32, i32
  }
  func.func @transform_1(%arg0: i32) -> (i32, i32) {
    %c0_i32 = arith.constant 0 : i32
    %c0_i32_0 = arith.constant 0 : i32
    return %arg0, %c0_i32 : i32, i32
  }
  func.func @transform_2(%arg0: i32) -> (i32, i32) {
    %c0_i32 = arith.constant 0 : i32
    %c0_i32_0 = arith.constant 0 : i32
    return %arg0, %c0_i32 : i32, i32
  }
  func.func @transform_3(%arg0: i32) -> (i32, i32) {
    %c0_i32 = arith.constant 0 : i32
    %c0_i32_0 = arith.constant 0 : i32
    return %arg0, %c0_i32 : i32, i32
  }
  func.func @transform_4(%arg0: i32) -> (i32, i32) {
    %c0_i32 = arith.constant 0 : i32
    %c0_i32_0 = arith.constant 0 : i32
    %c0_i32_1 = arith.constant 0 : i32
    return %c0_i32, %c0_i32_0 : i32, i32
  }
  func.func @transform_5(%arg0: i32) -> (i32, i32) {
    %c0_i32 = arith.constant 0 : i32
    %c0_i32_0 = arith.constant 0 : i32
    %c0_i32_1 = arith.constant 0 : i32
    return %c0_i32, %c0_i32_0 : i32, i32
  }
  func.func @transform_6(%arg0: i32) -> (i32, i32) {
    %c0_i32 = arith.constant 0 : i32
    %c0_i32_0 = arith.constant 0 : i32
    return %arg0, %c0_i32 : i32, i32
  }
}

module attributes {stable_mosaic.version = 11 : i64} {
  func.func @_matmul_kernel(%arg0: i32, %arg1: memref<32x128xbf16, #tpu.memory_space<vmem>>, %arg2: memref<128x64xbf16, #tpu.memory_space<vmem>>, %arg3: memref<32x64xf32, #tpu.memory_space<vmem>>) attributes {dimension_semantics = [#tpu.dimension_semantics<parallel>], iteration_bounds = array<i64: 1>, scalar_prefetch = 0 : i64, scratch_operands = 0 : i64, tpu.core_type = #tpu.core_type<tc>, window_params = [{transform_indices = @transform_0, window_bounds = array<i64: 32, 128>}, {pipeline_mode = #tpu.pipeline_mode<synchronous>, transform_indices = @transform_1, window_bounds = array<i64: 128, 64>}, {transform_indices = @transform_2, window_bounds = array<i64: 32, 64>}]} {
    %c0 = arith.constant 0 : index
    %c0_0 = arith.constant 0 : index
    %0 = vector.load %arg1[%c0, %c0_0] : memref<32x128xbf16, #tpu.memory_space<vmem>>, vector<32x128xbf16>
    %c0_1 = arith.constant 0 : index
    %c0_2 = arith.constant 0 : index
    %1 = vector.load %arg2[%c0_1, %c0_2] : memref<128x64xbf16, #tpu.memory_space<vmem>>, vector<128x64xbf16>
    %cst = arith.constant dense<0.000000e+00> : vector<32x64xf32>
    %2 = tpu.matmul %0, %1, %cst {dimension_numbers = #tpu.dot_dimension_numbers<[1], [0], [0], [1], [0, 0, 1, 1], [], []>} : vector<32x128xbf16>, vector<128x64xbf16>, vector<32x64xf32> -> vector<32x64xf32>
    %c0_3 = arith.constant 0 : index
    %c0_4 = arith.constant 0 : index
    %3 = vector.load %arg3[%c0_3, %c0_4] : memref<32x64xf32, #tpu.memory_space<vmem>>, vector<32x64xf32>
    tpu.vector_store %arg3[%c0_3, %c0_4], %2 {strides = array<i32>} : memref<32x64xf32, #tpu.memory_space<vmem>>, vector<32x64xf32>,
    return
  }
  func.func @transform_0(%arg0: i32) -> (i32, i32) {
    %c0_i32 = arith.constant 0 : i32
    %c0_i32_0 = arith.constant 0 : i32
    return %arg0, %c0_i32 : i32, i32
  }
  func.func @transform_1(%arg0: i32) -> (i32, i32) {
    %c0_i32 = arith.constant 0 : i32
    %c0_i32_0 = arith.constant 0 : i32
    %c0_i32_1 = arith.constant 0 : i32
    return %c0_i32, %c0_i32_0 : i32, i32
  }
  func.func @transform_2(%arg0: i32) -> (i32, i32) {
    %c0_i32 = arith.constant 0 : i32
    %c0_i32_0 = arith.constant 0 : i32
    return %arg0, %c0_i32 : i32, i32
  }
}

module attributes {stable_mosaic.version = 11 : i64} {
  func.func @_conv_pool_skip_kernel(%arg0: i32, %arg1: memref<32x128xbf16, #tpu.memory_space<vmem>>, %arg2: memref<32x128xbf16, #tpu.memory_space<vmem>>, %arg3: memref<32x128xbf16, #tpu.memory_space<vmem>>, %arg4: memref<32x128xbf16, #tpu.memory_space<vmem>>, %arg5: memref<128x64xbf16, #tpu.memory_space<vmem>>, %arg6: memref<1x64xf32, #tpu.memory_space<vmem>>, %arg7: memref<32x64xf32, #tpu.memory_space<vmem>>, %arg8: memref<32x64xf32, #tpu.memory_space<vmem>>) attributes {dimension_semantics = [#tpu.dimension_semantics<parallel>], iteration_bounds = array<i64: 1>, scalar_prefetch = 0 : i64, scratch_operands = 0 : i64, tpu.core_type = #tpu.core_type<tc>, window_params = [{transform_indices = @transform_0, window_bounds = array<i64: 32, 128>}, {transform_indices = @transform_1, window_bounds = array<i64: 32, 128>}, {transform_indices = @transform_2, window_bounds = array<i64: 32, 128>}, {transform_indices = @transform_3, window_bounds = array<i64: 32, 128>}, {pipeline_mode = #tpu.pipeline_mode<synchronous>, transform_indices = @transform_4, window_bounds = array<i64: 128, 64>}, {pipeline_mode = #tpu.pipeline_mode<synchronous>, transform_indices = @transform_5, window_bounds = array<i64: 1, 64>}, {transform_indices = @transform_6, window_bounds = array<i64: 32, 64>}, {transform_indices = @transform_7, window_bounds = array<i64: 32, 64>}]} {
    %c0 = arith.constant 0 : index
    %c0_0 = arith.constant 0 : index
    %0 = vector.load %arg5[%c0, %c0_0] : memref<128x64xbf16, #tpu.memory_space<vmem>>, vector<128x64xbf16>
    %c0_1 = arith.constant 0 : index
    %c0_2 = arith.constant 0 : index
    %1 = vector.load %arg1[%c0_1, %c0_2] : memref<32x128xbf16, #tpu.memory_space<vmem>>, vector<32x128xbf16>
    %cst = arith.constant dense<0.000000e+00> : vector<32x64xf32>
    %2 = tpu.matmul %1, %0, %cst {dimension_numbers = #tpu.dot_dimension_numbers<[1], [0], [0], [1], [0, 0, 1, 1], [], []>} : vector<32x128xbf16>, vector<128x64xbf16>, vector<32x64xf32> -> vector<32x64xf32>
    %c0_3 = arith.constant 0 : index
    %c0_4 = arith.constant 0 : index
    %3 = vector.load %arg2[%c0_3, %c0_4] : memref<32x128xbf16, #tpu.memory_space<vmem>>, vector<32x128xbf16>
    %cst_5 = arith.constant dense<0.000000e+00> : vector<32x64xf32>
    %4 = tpu.matmul %3, %0, %cst_5 {dimension_numbers = #tpu.dot_dimension_numbers<[1], [0], [0], [1], [0, 0, 1, 1], [], []>} : vector<32x128xbf16>, vector<128x64xbf16>, vector<32x64xf32> -> vector<32x64xf32>
    %5 = arith.maximumf %2, %4 : vector<32x64xf32>
    %c0_6 = arith.constant 0 : index
    %c0_7 = arith.constant 0 : index
    %6 = vector.load %arg3[%c0_6, %c0_7] : memref<32x128xbf16, #tpu.memory_space<vmem>>, vector<32x128xbf16>
    %cst_8 = arith.constant dense<0.000000e+00> : vector<32x64xf32>
    %7 = tpu.matmul %6, %0, %cst_8 {dimension_numbers = #tpu.dot_dimension_numbers<[1], [0], [0], [1], [0, 0, 1, 1], [], []>} : vector<32x128xbf16>, vector<128x64xbf16>, vector<32x64xf32> -> vector<32x64xf32>
    %c0_9 = arith.constant 0 : index
    %c0_10 = arith.constant 0 : index
    %8 = vector.load %arg4[%c0_9, %c0_10] : memref<32x128xbf16, #tpu.memory_space<vmem>>, vector<32x128xbf16>
    %cst_11 = arith.constant dense<0.000000e+00> : vector<32x64xf32>
    %9 = tpu.matmul %8, %0, %cst_11 {dimension_numbers = #tpu.dot_dimension_numbers<[1], [0], [0], [1], [0, 0, 1, 1], [], []>} : vector<32x128xbf16>, vector<128x64xbf16>, vector<32x64xf32> -> vector<32x64xf32>
    %10 = arith.maximumf %7, %9 : vector<32x64xf32>
    %11 = arith.maximumf %5, %10 : vector<32x64xf32>
    %c0_12 = arith.constant 0 : index
    %c0_13 = arith.constant 0 : index
    %12 = vector.load %arg6[%c0_12, %c0_13] : memref<1x64xf32, #tpu.memory_space<vmem>>, vector<1x64xf32>
    %13 = vector.broadcast %12 : vector<1x64xf32> to vector<32x64xf32>
    %14 = arith.addf %11, %13 : vector<32x64xf32>
    %cst_14 = arith.constant 0.000000e+00 : f32
    %15 = vector.broadcast %cst_14 : f32 to vector<32x64xf32>
    %16 = arith.maximumf %14, %15 : vector<32x64xf32>
    %c0_15 = arith.constant 0 : index
    %c0_16 = arith.constant 0 : index
    %17 = vector.load %arg7[%c0_15, %c0_16] : memref<32x64xf32, #tpu.memory_space<vmem>>, vector<32x64xf32>
    %18 = arith.addf %16, %17 : vector<32x64xf32>
    %c0_17 = arith.constant 0 : index
    %c0_18 = arith.constant 0 : index
    %19 = vector.load %arg8[%c0_17, %c0_18] : memref<32x64xf32, #tpu.memory_space<vmem>>, vector<32x64xf32>
    tpu.vector_store %arg8[%c0_17, %c0_18], %18 {strides = array<i32>} : memref<32x64xf32, #tpu.memory_space<vmem>>, vector<32x64xf32>,
    return
  }
  func.func @transform_0(%arg0: i32) -> (i32, i32) {
    %c0_i32 = arith.constant 0 : i32
    %c0_i32_0 = arith.constant 0 : i32
    return %arg0, %c0_i32 : i32, i32
  }
  func.func @transform_1(%arg0: i32) -> (i32, i32) {
    %c0_i32 = arith.constant 0 : i32
    %c0_i32_0 = arith.constant 0 : i32
    return %arg0, %c0_i32 : i32, i32
  }
  func.func @transform_2(%arg0: i32) -> (i32, i32) {
    %c0_i32 = arith.constant 0 : i32
    %c0_i32_0 = arith.constant 0 : i32
    return %arg0, %c0_i32 : i32, i32
  }
  func.func @transform_3(%arg0: i32) -> (i32, i32) {
    %c0_i32 = arith.constant 0 : i32
    %c0_i32_0 = arith.constant 0 : i32
    return %arg0, %c0_i32 : i32, i32
  }
  func.func @transform_4(%arg0: i32) -> (i32, i32) {
    %c0_i32 = arith.constant 0 : i32
    %c0_i32_0 = arith.constant 0 : i32
    %c0_i32_1 = arith.constant 0 : i32
    return %c0_i32, %c0_i32_0 : i32, i32
  }
  func.func @transform_5(%arg0: i32) -> (i32, i32) {
    %c0_i32 = arith.constant 0 : i32
    %c0_i32_0 = arith.constant 0 : i32
    %c0_i32_1 = arith.constant 0 : i32
    return %c0_i32, %c0_i32_0 : i32, i32
  }
  func.func @transform_6(%arg0: i32) -> (i32, i32) {
    %c0_i32 = arith.constant 0 : i32
    %c0_i32_0 = arith.constant 0 : i32
    return %arg0, %c0_i32 : i32, i32
  }
  func.func @transform_7(%arg0: i32) -> (i32, i32) {
    %c0_i32 = arith.constant 0 : i32
    %c0_i32_0 = arith.constant 0 : i32
    return %arg0, %c0_i32 : i32, i32
  }
}

</mosaic_0001>

<llo_original>
// kernel: conv_stem_forward.4
$region0: #{conv_stem_forward.4}
  #allocation0 [shape = 'u32[]', space=smem, size = 0x4, offset = 0x4, fixed_abs, tag = 'smem constant byte address 0x4 - core index']
  #allocation1 [shape = 'u32[144,128]{1,0:T(1,128)}', space=vmem, size = 0x12000, scoped, tag = 'internal scratch']
  %s0 = inlined_call_operand.vmem [shape: bf16[32,128], index: 0, kind: input, shape index: {}]
  %s1 = inlined_call_operand.vmem [shape: bf16[128,64], index: 1, kind: input, shape index: {}]
  %s2 = inlined_call_operand.vmem [shape: f32[32,64], index: 2, kind: output, shape index: {}]
  %s3 = sld [smem:[#allocation0]]
  $region18: #{conv_stem_forward.4} parent=0
    _
  %s5 = ssub.s32 1, %s3
  %s6 = scalar_select 0, %s5, %s3
  // Predicated region
  $region2: #{conv_stem_forward.4} parent=0 // pred_check
    _
  $region3: #{conv_stem_forward.4} parent=0 // pred_check_branch
    %8 = sbr.rel (0) target = $region5
  $region4: #{conv_stem_forward.4} parent=0 // pred_region
    _
  $region5: #{conv_stem_forward.4} parent=0 // pred_fallthru
    _
  // Predicated region
  $region6: #{conv_stem_forward.4} parent=0 // pred_check
    _
  $region7: #{conv_stem_forward.4} parent=0 // pred_check_branch
    %10 = sbr.rel (0) target = $region9
  $region8: #{conv_stem_forward.4} parent=0 // pred_region
    _
  $region9: #{conv_stem_forward.4} parent=0 // pred_fallthru
    _
  %v12 = vld [vmem:[%s0] sm:$0xf]
  %v13 = vld [vmem:[%s0 + $0x4] sm:$0xf]
  %v14 = vld [vmem:[%s0 + $0x8] sm:$0xf]
  %v15 = vld [vmem:[%s0 + $0xc] sm:$0xf]
  %v16 = vld [vmem:[%s1] sm:$0xf]
  %v17 = vld [vmem:[%s1 + $0x4] sm:$0xf]
  %v18 = vld [vmem:[%s1 + $0x8] sm:$0xf]
  %v19 = vld [vmem:[%s1 + $0xc] sm:$0xf]
  %v20 = vld [vmem:[%s1 + $0x10] sm:$0xf]
  %v21 = vld [vmem:[%s1 + $0x14] sm:$0xf]
  %v22 = vld [vmem:[%s1 + $0x18] sm:$0xf]
  %v23 = vld [vmem:[%s1 + $0x1c] sm:$0xf]
  %v24 = vld [vmem:[%s1 + $0x20] sm:$0xf]
  %v25 = vld [vmem:[%s1 + $0x24] sm:$0xf]
  %v26 = vld [vmem:[%s1 + $0x28] sm:$0xf]
  %v27 = vld [vmem:[%s1 + $0x2c] sm:$0xf]
  %v28 = vld [vmem:[%s1 + $0x30] sm:$0xf]
  %v29 = vld [vmem:[%s1 + $0x34] sm:$0xf]
  %v30 = vld [vmem:[%s1 + $0x38] sm:$0xf]
  %v31 = vld [vmem:[%s1 + $0x3c] sm:$0xf]
  %v36 = vunpack.c.l.b16 %v12
  %v37 = vunpack.c.l.b16 %v13
  %v38 = vunpack.c.l.b16 %v14
  %v39 = vunpack.c.l.b16 %v15
  %v40 = vpack.c.b16 %v37, %v36
  %v41 = vpack.c.b16 %v39, %v38
  %v60 = vunpack.c.l.b16 %v16
  %v61 = vunpack.c.l.b16 %v17
  %v62 = vunpack.c.l.b16 %v18
  %v63 = vunpack.c.l.b16 %v19
  %v64 = vunpack.c.l.b16 %v20
  %v65 = vunpack.c.l.b16 %v21
  %v66 = vunpack.c.l.b16 %v22
  %v67 = vunpack.c.l.b16 %v23
  %v68 = vunpack.c.l.b16 %v24
  %v69 = vunpack.c.l.b16 %v25
  %v70 = vunpack.c.l.b16 %v26
  %v71 = vunpack.c.l.b16 %v27
  %v72 = vunpack.c.l.b16 %v28
  %v73 = vunpack.c.l.b16 %v29
  %v74 = vunpack.c.l.b16 %v30
  %v75 = vunpack.c.l.b16 %v31
  %v76 = vpack.c.b16 %v61, %v60
  %v77 = vpack.c.b16 %v63, %v62
  %v78 = vpack.c.b16 %v65, %v64
  %v79 = vpack.c.b16 %v67, %v66
  %v80 = vpack.c.b16 %v69, %v68
  %v81 = vpack.c.b16 %v71, %v70
  %v82 = vpack.c.b16 %v73, %v72
  %v83 = vpack.c.b16 %v75, %v74
  %92 = vmatprep.subr.bf16.mxu0 0
  %93 = vmatpush1.bf16.msra.mxu0 %v76
  %94 = vmatprep.subr.bf16.mxu0 0
  %95 = vmatpush1.bf16.msra.mxu0 %v77
  %96 = vmatprep.subr.bf16.mxu0 0
  %97 = vmatpush1.bf16.msra.mxu0 %v78
  %98 = vmatprep.subr.bf16.mxu0 0
  %99 = vmatpush1.bf16.msra.mxu0 %v79
  %100 = vmatprep.subr.bf16.mxu0 0
  %101 = vmatpush1.bf16.msra.mxu0 %v80
  %102 = vmatprep.subr.bf16.mxu0 0
  %103 = vmatpush1.bf16.msra.mxu0 %v81
  %104 = vmatprep.subr.bf16.mxu0 0
  %105 = vmatpush1.bf16.msra.mxu0 %v82
  %106 = vmatprep.subr.bf16.mxu0 0
  %107 = vmatpush1.bf16.msra.mxu0 %v83
  %108 = vmatprep.subr.bf16.mxu0 0
  %109 = vmatpush1.bf16.msra.mxu0 0
  %110 = vmatprep.subr.bf16.mxu0 0
  %111 = vmatpush1.bf16.msra.mxu0 0
  %112 = vmatprep.subr.bf16.mxu0 0
  %113 = vmatpush1.bf16.msra.mxu0 0
  %114 = vmatprep.subr.bf16.mxu0 0
  %115 = vmatpush1.bf16.msra.mxu0 0
  %116 = vmatprep.subr.bf16.mxu0 0
  %117 = vmatpush1.bf16.msra.mxu0 0
  %118 = vmatprep.subr.bf16.mxu0 0
  %119 = vmatpush1.bf16.msra.mxu0 0
  %120 = vmatprep.subr.bf16.mxu0 0
  %121 = vmatpush1.bf16.msra.mxu0 0
  %122 = vmatprep.subr.bf16.mxu0 0
  %123 = vmatpush1.bf16.msra.mxu0 0
  %124 = vmatprep.mubr.bf16.mxu0 0
  %125 = vmatmul.mubr.bf16.gmra.mrb[0].mxu0 %v40
  %v126 = vpop.f32.mrb[0].mxu0
  %v127 = vadd.f32 0.0, %v126
  %v128 = vpop.f32.mrb[0].mxu0
  %v129 = vpop.f32.mrb[0].mxu0
  %v130 = vadd.f32 0.0, %v129
  %v131 = vpop.f32.mrb[0].mxu0
  %132 = vmatprep.mubr.bf16.mxu0 0
  %133 = vmatmul.mubr.bf16.gmra.mrb[0].mxu0 %v41
  %v134 = vpop.f32.mrb[0].mxu0
  %v135 = vadd.f32 0.0, %v134
  %v136 = vpop.f32.mrb[0].mxu0
  %v137 = vpop.f32.mrb[0].mxu0
  %v138 = vadd.f32 0.0, %v137
  %v139 = vpop.f32.mrb[0].mxu0
  %140 = vdwg.mxu0
  %vm141 = vcmask 523264
  %142 = vst.msk [vmem:[%s2] sm:$0xff] %vm141, %v127
  %143 = vst.msk [vmem:[%s2 + $0x8] sm:$0xff] %vm141, %v130
  %144 = vst.msk [vmem:[%s2 + $0x10] sm:$0xff] %vm141, %v135
  %145 = vst.msk [vmem:[%s2 + $0x18] sm:$0xff] %vm141, %v138
  // Predicated region
  $region10: #{conv_stem_forward.4} parent=0 // pred_check
    _
  $region11: #{conv_stem_forward.4} parent=0 // pred_check_branch
    %147 = sbr.rel (0) target = $region13
  $region12: #{conv_stem_forward.4} parent=0 // pred_region
    _
  $region13: #{conv_stem_forward.4} parent=0 // pred_fallthru
    _
  // Predicated region
  $region14: #{conv_stem_forward.4} parent=0 // pred_check
    _
  $region15: #{conv_stem_forward.4} parent=0 // pred_check_branch
    %149 = sbr.rel (0) target = $region17
  $region16: #{conv_stem_forward.4} parent=0 // pred_region
    _
  $region17: #{conv_stem_forward.4} parent=0 // pred_fallthru
    _

// kernel: conv_stem_forward.5
$region0: #{conv_stem_forward.5}
  #allocation0 [shape = 'u32[]', space=smem, size = 0x4, offset = 0x4, fixed_abs, tag = 'smem constant byte address 0x4 - core index']
  #allocation1 [shape = 'u32[144,128]{1,0:T(1,128)}', space=vmem, size = 0x12000, scoped, tag = 'internal scratch']
  %s0 = inlined_call_operand.vmem [shape: bf16[32,128], index: 0, kind: input, shape index: {}]
  %s1 = inlined_call_operand.vmem [shape: bf16[32,128], index: 1, kind: input, shape index: {}]
  %s2 = inlined_call_operand.vmem [shape: bf16[32,128], index: 2, kind: input, shape index: {}]
  %s3 = inlined_call_operand.vmem [shape: bf16[32,128], index: 3, kind: input, shape index: {}]
  %s4 = inlined_call_operand.vmem [shape: bf16[128,64], index: 4, kind: input, shape index: {}]
  %s5 = inlined_call_operand.vmem [shape: f32[1,64], index: 5, kind: input, shape index: {}]
  %s6 = inlined_call_operand.vmem [shape: f32[32,64], index: 6, kind: input, shape index: {}]
  %s7 = inlined_call_operand.hbm [shape: f32[32,64], index: 7, kind: output, shape index: {}]
  %s8 = sld [smem:[#allocation0]]
  $region38: #{conv_stem_forward.5} parent=0
    _
  %s10 = ssub.s32 1, %s8
  %s11 = scalar_select 0, %s10, %s8
  $region1: #{conv_stem_forward.5} parent=0
    #allocation2 [shape = 'u8[16384]{0}', space=vmem, size = 0x4000, scoped, tag = 'output window, operand 0, single buffered']
    #allocation3 [shape = 's32[1]{0}', space=sflag, size = 0x4, scoped, tag = 'scoped memory for conv_stem_forward.5']
    %12 = vsyncpa [#allocation3], 0
    // Predicated region
    $region2: #{conv_stem_forward.5} parent=1 // pred_check
      _
    $region3: #{conv_stem_forward.5} parent=1 // pred_check_branch
      %14 = sbr.rel (0) target = $region5
    $region4: #{conv_stem_forward.5} parent=1 // pred_region
      _
    $region5: #{conv_stem_forward.5} parent=1 // pred_fallthru
      _
    // Predicated region
    $region6: #{conv_stem_forward.5} parent=1 // pred_check
      _
    $region7: #{conv_stem_forward.5} parent=1 // pred_check_branch
      %16 = sbr.rel (0) target = $region9
    $region8: #{conv_stem_forward.5} parent=1 // pred_region
      _
    $region9: #{conv_stem_forward.5} parent=1 // pred_fallthru
      _
    // Predicated region
    $region10: #{conv_stem_forward.5} parent=1 // pred_check
      _
    $region11: #{conv_stem_forward.5} parent=1 // pred_check_branch
      %18 = sbr.rel (0) target = $region13
    $region12: #{conv_stem_forward.5} parent=1 // pred_region
      _
    $region13: #{conv_stem_forward.5} parent=1 // pred_fallthru
      _
    // Predicated region
    $region14: #{conv_stem_forward.5} parent=1 // pred_check
      _
    $region15: #{conv_stem_forward.5} parent=1 // pred_check_branch
      %20 = sbr.rel (0) target = $region17
    $region16: #{conv_stem_forward.5} parent=1 // pred_region
      _
    $region17: #{conv_stem_forward.5} parent=1 // pred_fallthru
      _
    // Predicated region
    $region18: #{conv_stem_forward.5} parent=1 // pred_check
      _
    $region19: #{conv_stem_forward.5} parent=1 // pred_check_branch
      %22 = sbr.rel (0) target = $region21
    $region20: #{conv_stem_forward.5} parent=1 // pred_region
      _
    $region21: #{conv_stem_forward.5} parent=1 // pred_fallthru
      _
    // Predicated region
    $region22: #{conv_stem_forward.5} parent=1 // pred_check
      _
    $region23: #{conv_stem_forward.5} parent=1 // pred_check_branch
      %24 = sbr.rel (0) target = $region25
    $region24: #{conv_stem_forward.5} parent=1 // pred_region
      _
    $region25: #{conv_stem_forward.5} parent=1 // pred_fallthru
      _
    // Predicated region
    $region26: #{conv_stem_forward.5} parent=1 // pred_check
      _
    $region27: #{conv_stem_forward.5} parent=1 // pred_check_branch
      %26 = sbr.rel (0) target = $region29
    $region28: #{conv_stem_forward.5} parent=1 // pred_region
      _
    $region29: #{conv_stem_forward.5} parent=1 // pred_fallthru
      _
    %v28 = vld [vmem:[%s4] sm:$0xf]
    %v29 = vld [vmem:[%s4 + $0x4] sm:$0xf]
    %v30 = vld [vmem:[%s4 + $0x8] sm:$0xf]
    %v31 = vld [vmem:[%s4 + $0xc] sm:$0xf]
    %v32 = vld [vmem:[%s4 + $0x10] sm:$0xf]
    %v33 = vld [vmem:[%s4 + $0x14] sm:$0xf]
    %v34 = vld [vmem:[%s4 + $0x18] sm:$0xf]
    %v35 = vld [vmem:[%s4 + $0x1c] sm:$0xf]
    %v36 = vld [vmem:[%s4 + $0x20] sm:$0xf]
    %v37 = vld [vmem:[%s4 + $0x24] sm:$0xf]
    %v38 = vld [vmem:[%s4 + $0x28] sm:$0xf]
    %v39 = vld [vmem:[%s4 + $0x2c] sm:$0xf]
    %v40 = vld [vmem:[%s4 + $0x30] sm:$0xf]
    %v41 = vld [vmem:[%s4 + $0x34] sm:$0xf]
    %v42 = vld [vmem:[%s4 + $0x38] sm:$0xf]
    %v43 = vld [vmem:[%s4 + $0x3c] sm:$0xf]
    %v44 = vld [vmem:[%s0] sm:$0xf]
    %v45 = vld [vmem:[%s0 + $0x4] sm:$0xf]
    %v46 = vld [vmem:[%s0 + $0x8] sm:$0xf]
    %v47 = vld [vmem:[%s0 + $0xc] sm:$0xf]
    %v52 = vunpack.c.l.b16 %v44
    %v53 = vunpack.c.l.b16 %v45
    %v54 = vunpack.c.l.b16 %v46
    %v55 = vunpack.c.l.b16 %v47
    %v56 = vpack.c.b16 %v53, %v52
    %v57 = vpack.c.b16 %v55, %v54
    %v76 = vunpack.c.l.b16 %v28
    %v77 = vunpack.c.l.b16 %v29
    %v78 = vunpack.c.l.b16 %v30
    %v79 = vunpack.c.l.b16 %v31
    %v80 = vunpack.c.l.b16 %v32
    %v81 = vunpack.c.l.b16 %v33
    %v82 = vunpack.c.l.b16 %v34
    %v83 = vunpack.c.l.b16 %v35
    %v84 = vunpack.c.l.b16 %v36
    %v85 = vunpack.c.l.b16 %v37
    %v86 = vunpack.c.l.b16 %v38
    %v87 = vunpack.c.l.b16 %v39
    %v88 = vunpack.c.l.b16 %v40
    %v89 = vunpack.c.l.b16 %v41
    %v90 = vunpack.c.l.b16 %v42
    %v91 = vunpack.c.l.b16 %v43
    %v92 = vpack.c.b16 %v77, %v76
    %v93 = vpack.c.b16 %v79, %v78
    %v94 = vpack.c.b16 %v81, %v80
    %v95 = vpack.c.b16 %v83, %v82
    %v96 = vpack.c.b16 %v85, %v84
    %v97 = vpack.c.b16 %v87, %v86
    %v98 = vpack.c.b16 %v89, %v88
    %v99 = vpack.c.b16 %v91, %v90
    %108 = vmatprep.subr.bf16.mxu0 0
    %109 = vmatpush1.bf16.msra.mxu0 %v92
    %110 = vmatprep.subr.bf16.mxu0 0
    %111 = vmatpush1.bf16.msra.mxu0 %v93
    %112 = vmatprep.subr.bf16.mxu0 0
    %113 = vmatpush1.bf16.msra.mxu0 %v94
    %114 = vmatprep.subr.bf16.mxu0 0
    %115 = vmatpush1.bf16.msra.mxu0 %v95
    %116 = vmatprep.subr.bf16.mxu0 0
    %117 = vmatpush1.bf16.msra.mxu0 %v96
    %118 = vmatprep.subr.bf16.mxu0 0
    %119 = vmatpush1.bf16.msra.mxu0 %v97
    %120 = vmatprep.subr.bf16.mxu0 0
    %121 = vmatpush1.bf16.msra.mxu0 %v98
    %122 = vmatprep.subr.bf16.mxu0 0
    %123 = vmatpush1.bf16.msra.mxu0 %v99
    %124 = vmatprep.subr.bf16.mxu0 0
    %125 = vmatpush1.bf16.msra.mxu0 0
    %126 = vmatprep.subr.bf16.mxu0 0
    %127 = vmatpush1.bf16.msra.mxu0 0
    %128 = vmatprep.subr.bf16.mxu0 0
    %129 = vmatpush1.bf16.msra.mxu0 0
    %130 = vmatprep.subr.bf16.mxu0 0
    %131 = vmatpush1.bf16.msra.mxu0 0
    %132 = vmatprep.subr.bf16.mxu0 0
    %133 = vmatpush1.bf16.msra.mxu0 0
    %134 = vmatprep.subr.bf16.mxu0 0
    %135 = vmatpush1.bf16.msra.mxu0 0
    %136 = vmatprep.subr.bf16.mxu0 0
    %137 = vmatpush1.bf16.msra.mxu0 0
    %138 = vmatprep.subr.bf16.mxu0 0
    %139 = vmatpush1.bf16.msra.mxu0 0
    %140 = vmatprep.mubr.bf16.mxu0 0
    %141 = vmatmul.mubr.bf16.gmra.mrb[0].mxu0 %v56
    %v142 = vpop.f32.mrb[0].mxu0
    %v143 = vadd.f32 0.0, %v142
    %v144 = vpop.f32.mrb[0].mxu0
    %v145 = vpop.f32.mrb[0].mxu0
    %v146 = vadd.f32 0.0, %v145
    %v147 = vpop.f32.mrb[0].mxu0
    %148 = vmatprep.mubr.bf16.mxu0 0
    %149 = vmatmul.mubr.bf16.gmra.mrb[0].mxu0 %v57
    %v150 = vpop.f32.mrb[0].mxu0
    %v151 = vadd.f32 0.0, %v150
    %v152 = vpop.f32.mrb[0].mxu0
    %v153 = vpop.f32.mrb[0].mxu0
    %v154 = vadd.f32 0.0, %v153
    %v155 = vpop.f32.mrb[0].mxu0
    %156 = vdwg.mxu0
    %v157 = vld [vmem:[%s1] sm:$0xf]
    %v158 = vld [vmem:[%s1 + $0x4] sm:$0xf]
    %v159 = vld [vmem:[%s1 + $0x8] sm:$0xf]
    %v160 = vld [vmem:[%s1 + $0xc] sm:$0xf]
    %v165 = vunpack.c.l.b16 %v157
    %v166 = vunpack.c.l.b16 %v158
    %v167 = vunpack.c.l.b16 %v159
    %v168 = vunpack.c.l.b16 %v160
    %v169 = vpack.c.b16 %v166, %v165
    %v170 = vpack.c.b16 %v168, %v167
    %173 = vmatprep.subr.bf16.mxu0 0
    %174 = vmatpush1.bf16.msra.mxu0 %v92
    %175 = vmatprep.subr.bf16.mxu0 0
    %176 = vmatpush1.bf16.msra.mxu0 %v93
    %177 = vmatprep.subr.bf16.mxu0 0
    %178 = vmatpush1.bf16.msra.mxu0 %v94
    %179 = vmatprep.subr.bf16.mxu0 0
    %180 = vmatpush1.bf16.msra.mxu0 %v95
    %181 = vmatprep.subr.bf16.mxu0 0
    %182 = vmatpush1.bf16.msra.mxu0 %v96
    %183 = vmatprep.subr.bf16.mxu0 0
    %184 = vmatpush1.bf16.msra.mxu0 %v97
    %185 = vmatprep.subr.bf16.mxu0 0
    %186 = vmatpush1.bf16.msra.mxu0 %v98
    %187 = vmatprep.subr.bf16.mxu0 0
    %188 = vmatpush1.bf16.msra.mxu0 %v99
    %189 = vmatprep.subr.bf16.mxu0 0
    %190 = vmatpush1.bf16.msra.mxu0 0
    %191 = vmatprep.subr.bf16.mxu0 0
    %192 = vmatpush1.bf16.msra.mxu0 0
    %193 = vmatprep.subr.bf16.mxu0 0
    %194 = vmatpush1.bf16.msra.mxu0 0
    %195 = vmatprep.subr.bf16.mxu0 0
    %196 = vmatpush1.bf16.msra.mxu0 0
    %197 = vmatprep.subr.bf16.mxu0 0
    %198 = vmatpush1.bf16.msra.mxu0 0
    %199 = vmatprep.subr.bf16.mxu0 0
    %200 = vmatpush1.bf16.msra.mxu0 0
    %201 = vmatprep.subr.bf16.mxu0 0
    %202 = vmatpush1.bf16.msra.mxu0 0
    %203 = vmatprep.subr.bf16.mxu0 0
    %204 = vmatpush1.bf16.msra.mxu0 0
    %205 = vmatprep.mubr.bf16.mxu0 0
    %206 = vmatmul.mubr.bf16.gmra.mrb[0].mxu0 %v169
    %v207 = vpop.f32.mrb[0].mxu0
    %v208 = vadd.f32 0.0, %v207
    %v209 = vpop.f32.mrb[0].mxu0
    %v210 = vpop.f32.mrb[0].mxu0
    %v211 = vadd.f32 0.0, %v210
    %v212 = vpop.f32.mrb[0].mxu0
    %213 = vmatprep.mubr.bf16.mxu0 0
    %214 = vmatmul.mubr.bf16.gmra.mrb[0].mxu0 %v170
    %v215 = vpop.f32.mrb[0].mxu0
    %v216 = vadd.f32 0.0, %v215
    %v217 = vpop.f32.mrb[0].mxu0
    %v218 = vpop.f32.mrb[0].mxu0
    %v219 = vadd.f32 0.0, %v218
    %v220 = vpop.f32.mrb[0].mxu0
    %221 = vdwg.mxu0
    %v222 = vmax.f32 %v143, %v208
    %v223 = vmax.f32 %v146, %v211
    %v224 = vmax.f32 %v151, %v216
    %v225 = vmax.f32 %v154, %v219
    %v226 = vld [vmem:[%s2] sm:$0xf]
    %v227 = vld [vmem:[%s2 + $0x4] sm:$0xf]
    %v228 = vld [vmem:[%s2 + $0x8] sm:$0xf]
    %v229 = vld [vmem:[%s2 + $0xc] sm:$0xf]
    %v234 = vunpack.c.l.b16 %v226
    %v235 = vunpack.c.l.b16 %v227
    %v236 = vunpack.c.l.b16 %v228
    %v237 = vunpack.c.l.b16 %v229
    %v238 = vpack.c.b16 %v235, %v234
    %v239 = vpack.c.b16 %v237, %v236
    %242 = vmatprep.subr.bf16.mxu0 0
    %243 = vmatpush1.bf16.msra.mxu0 %v92
    %244 = vmatprep.subr.bf16.mxu0 0
    %245 = vmatpush1.bf16.msra.mxu0 %v93
    %246 = vmatprep.subr.bf16.mxu0 0
    %247 = vmatpush1.bf16.msra.mxu0 %v94
    %248 = vmatprep.subr.bf16.mxu0 0
    %249 = vmatpush1.bf16.msra.mxu0 %v95
    %250 = vmatprep.subr.bf16.mxu0 0
    %251 = vmatpush1.bf16.msra.mxu0 %v96
    %252 = vmatprep.subr.bf16.mxu0 0
    %253 = vmatpush1.bf16.msra.mxu0 %v97
    %254 = vmatprep.subr.bf16.mxu0 0
    %255 = vmatpush1.bf16.msra.mxu0 %v98
    %256 = vmatprep.subr.bf16.mxu0 0
    %257 = vmatpush1.bf16.msra.mxu0 %v99
    %258 = vmatprep.subr.bf16.mxu0 0
    %259 = vmatpush1.bf16.msra.mxu0 0
    %260 = vmatprep.subr.bf16.mxu0 0
    %261 = vmatpush1.bf16.msra.mxu0 0
    %262 = vmatprep.subr.bf16.mxu0 0
    %263 = vmatpush1.bf16.msra.mxu0 0
    %264 = vmatprep.subr.bf16.mxu0 0
    %265 = vmatpush1.bf16.msra.mxu0 0
    %266 = vmatprep.subr.bf16.mxu0 0
    %267 = vmatpush1.bf16.msra.mxu0 0
    %268 = vmatprep.subr.bf16.mxu0 0
    %269 = vmatpush1.bf16.msra.mxu0 0
    %270 = vmatprep.subr.bf16.mxu0 0
    %271 = vmatpush1.bf16.msra.mxu0 0
    %272 = vmatprep.subr.bf16.mxu0 0
    %273 = vmatpush1.bf16.msra.mxu0 0
    %274 = vmatprep.mubr.bf16.mxu0 0
    %275 = vmatmul.mubr.bf16.gmra.mrb[0].mxu0 %v238
    %v276 = vpop.f32.mrb[0].mxu0
    %v277 = vadd.f32 0.0, %v276
    %v278 = vpop.f32.mrb[0].mxu0
    %v279 = vpop.f32.mrb[0].mxu0
    %v280 = vadd.f32 0.0, %v279
    %v281 = vpop.f32.mrb[0].mxu0
    %282 = vmatprep.mubr.bf16.mxu0 0
    %283 = vmatmul.mubr.bf16.gmra.mrb[0].mxu0 %v239
    %v284 = vpop.f32.mrb[0].mxu0
    %v285 = vadd.f32 0.0, %v284
    %v286 = vpop.f32.mrb[0].mxu0
    %v287 = vpop.f32.mrb[0].mxu0
    %v288 = vadd.f32 0.0, %v287
    %v289 = vpop.f32.mrb[0].mxu0
    %290 = vdwg.mxu0
    %v291 = vld [vmem:[%s3] sm:$0xf]
    %v292 = vld [vmem:[%s3 + $0x4] sm:$0xf]
    %v293 = vld [vmem:[%s3 + $0x8] sm:$0xf]
    %v294 = vld [vmem:[%s3 + $0xc] sm:$0xf]
    %v299 = vunpack.c.l.b16 %v291
    %v300 = vunpack.c.l.b16 %v292
    %v301 = vunpack.c.l.b16 %v293
    %v302 = vunpack.c.l.b16 %v294
    %v303 = vpack.c.b16 %v300, %v299
    %v304 = vpack.c.b16 %v302, %v301
    %307 = vmatprep.subr.bf16.mxu0 0
    %308 = vmatpush1.bf16.msra.mxu0 %v92
    %309 = vmatprep.subr.bf16.mxu0 0
    %310 = vmatpush1.bf16.msra.mxu0 %v93
    %311 = vmatprep.subr.bf16.mxu0 0
    %312 = vmatpush1.bf16.msra.mxu0 %v94
    %313 = vmatprep.subr.bf16.mxu0 0
    %314 = vmatpush1.bf16.msra.mxu0 %v95
    %315 = vmatprep.subr.bf16.mxu0 0
    %316 = vmatpush1.bf16.msra.mxu0 %v96
    %317 = vmatprep.subr.bf16.mxu0 0
    %318 = vmatpush1.bf16.msra.mxu0 %v97
    %319 = vmatprep.subr.bf16.mxu0 0
    %320 = vmatpush1.bf16.msra.mxu0 %v98
    %321 = vmatprep.subr.bf16.mxu0 0
    %322 = vmatpush1.bf16.msra.mxu0 %v99
    %323 = vmatprep.subr.bf16.mxu0 0
    %324 = vmatpush1.bf16.msra.mxu0 0
    %325 = vmatprep.subr.bf16.mxu0 0
    %326 = vmatpush1.bf16.msra.mxu0 0
    %327 = vmatprep.subr.bf16.mxu0 0
    %328 = vmatpush1.bf16.msra.mxu0 0
    %329 = vmatprep.subr.bf16.mxu0 0
    %330 = vmatpush1.bf16.msra.mxu0 0
    %331 = vmatprep.subr.bf16.mxu0 0
    %332 = vmatpush1.bf16.msra.mxu0 0
    %333 = vmatprep.subr.bf16.mxu0 0
    %334 = vmatpush1.bf16.msra.mxu0 0
    %335 = vmatprep.subr.bf16.mxu0 0
    %336 = vmatpush1.bf16.msra.mxu0 0
    %337 = vmatprep.subr.bf16.mxu0 0
    %338 = vmatpush1.bf16.msra.mxu0 0
    %339 = vmatprep.mubr.bf16.mxu0 0
    %340 = vmatmul.mubr.bf16.gmra.mrb[0].mxu0 %v303
    %v341 = vpop.f32.mrb[0].mxu0
    %v342 = vadd.f32 0.0, %v341
    %v343 = vpop.f32.mrb[0].mxu0
    %v344 = vpop.f32.mrb[0].mxu0
    %v345 = vadd.f32 0.0, %v344
    %v346 = vpop.f32.mrb[0].mxu0
    %347 = vmatprep.mubr.bf16.mxu0 0
    %348 = vmatmul.mubr.bf16.gmra.mrb[0].mxu0 %v304
    %v349 = vpop.f32.mrb[0].mxu0
    %v350 = vadd.f32 0.0, %v349
    %v351 = vpop.f32.mrb[0].mxu0
    %v352 = vpop.f32.mrb[0].mxu0
    %v353 = vadd.f32 0.0, %v352
    %v354 = vpop.f32.mrb[0].mxu0
    %355 = vdwg.mxu0
    %v356 = vmax.f32 %v277, %v342
    %v357 = vmax.f32 %v280, %v345
    %v358 = vmax.f32 %v285, %v350
    %v359 = vmax.f32 %v288, %v353
    %v360 = vmax.f32 %v222, %v356
    %v361 = vmax.f32 %v223, %v357
    %v362 = vmax.f32 %v224, %v358
    %v363 = vmax.f32 %v225, %v359
    %v364 = vld [vmem:[%s5] sm:$0x1]
    %v366 = vlaneseq
    %v367 = vshrl.u32 %v366, 7
    %v368 = vsub.s32 0, %v367
    %v369 = vrot.slane %v364, %v368
    %v371 = vadd.f32 %v360, %v369
    %v372 = vadd.f32 %v361, %v369
    %v373 = vadd.f32 %v362, %v369
    %v374 = vadd.f32 %v363, %v369
    %v375 = vmax.f32 %v371, 0.0
    %v376 = vmax.f32 %v372, 0.0
    %v377 = vmax.f32 %v373, 0.0
    %v378 = vmax.f32 %v374, 0.0
    %v379 = vld [vmem:[%s6] sm:$0xff]
    %v380 = vld [vmem:[%s6 + $0x8] sm:$0xff]
    %v381 = vld [vmem:[%s6 + $0x10] sm:$0xff]
    %v382 = vld [vmem:[%s6 + $0x18] sm:$0xff]
    %v383 = vadd.f32 %v375, %v379
    %v384 = vadd.f32 %v376, %v380
    %v385 = vadd.f32 %v377, %v381
    %v386 = vadd.f32 %v378, %v382
    %vm387 = vcmask 523264
    %388 = vst.msk [vmem:[#allocation2] sm:$0xff] %vm387, %v383
    %389 = vst.msk [vmem:[#allocation2 + $0x8] sm:$0xff] %vm387, %v384
    %390 = vst.msk [vmem:[#allocation2 + $0x10] sm:$0xff] %vm387, %v385
    %391 = vst.msk [vmem:[#allocation2 + $0x18] sm:$0xff] %vm387, %v386
    // Predicated region
    $region30: #{conv_stem_forward.5} parent=1 // pred_check
      _
    $region31: #{conv_stem_forward.5} parent=1 // pred_check_branch
      %393 = sbr.rel (0) target = $region33
    $region32: #{conv_stem_forward.5} parent=1 // pred_region
      %s395 = ssub.s32 512, 512
      %396 = vsyncadd [#allocation3], %s395
      %s397 = sshll.u32 [#allocation2], 4
      %s398 = int_to_ptr.vmem [resolvable:$true] %s397
      %403 = dma.vmem_to_hbm [thread:$0]  %s398, 512, %s7, [#allocation3], 128, 128, 8
    $region33: #{conv_stem_forward.5} parent=1 // pred_fallthru
      _
    // Predicated region
    $region34: #{conv_stem_forward.5} parent=1 // pred_check
      _
    $region35: #{conv_stem_forward.5} parent=1 // pred_check_branch
      %405 = sbr.rel (0) target = $region37
    $region36: #{conv_stem_forward.5} parent=1 // pred_region
      %406 = dma.done [#allocation3], 512
    $region37: #{conv_stem_forward.5} parent=1 // pred_fallthru
      _
    %407 = vsyncpa [#allocation3], 1

// kernel: conv_stem_forward.3
$region0: #{conv_stem_forward.3}
  #allocation0 [shape = 'u32[]', space=smem, size = 0x4, offset = 0x4, fixed_abs, tag = 'smem constant byte address 0x4 - core index']
  #allocation1 [shape = 'u32[144,128]{1,0:T(1,128)}', space=vmem, size = 0x12000, scoped, tag = 'internal scratch']
  %s0 = inlined_call_operand.vmem [shape: bf16[128,12], index: 0, kind: input, shape index: {}]
  %s1 = inlined_call_operand.vmem [shape: bf16[128,12], index: 1, kind: input, shape index: {}]
  %s2 = inlined_call_operand.vmem [shape: bf16[128,12], index: 2, kind: input, shape index: {}]
  %s3 = inlined_call_operand.vmem [shape: bf16[128,12], index: 3, kind: input, shape index: {}]
  %s4 = inlined_call_operand.vmem [shape: bf16[12,32], index: 4, kind: input, shape index: {}]
  %s5 = inlined_call_operand.vmem [shape: f32[1,32], index: 5, kind: input, shape index: {}]
  %s6 = inlined_call_operand.vmem [shape: f32[128,32], index: 6, kind: output, shape index: {}]
  %s7 = sld [smem:[#allocation0]]
  $region34: #{conv_stem_forward.3} parent=0
    _
  %s9 = ssub.s32 1, %s7
  %s10 = scalar_select 0, %s9, %s7
  // Predicated region
  $region2: #{conv_stem_forward.3} parent=0 // pred_check
    _
  $region3: #{conv_stem_forward.3} parent=0 // pred_check_branch
    %12 = sbr.rel (0) target = $region5
  $region4: #{conv_stem_forward.3} parent=0 // pred_region
    _
  $region5: #{conv_stem_forward.3} parent=0 // pred_fallthru
    _
  // Predicated region
  $region6: #{conv_stem_forward.3} parent=0 // pred_check
    _
  $region7: #{conv_stem_forward.3} parent=0 // pred_check_branch
    %14 = sbr.rel (0) target = $region9
  $region8: #{conv_stem_forward.3} parent=0 // pred_region
    _
  $region9: #{conv_stem_forward.3} parent=0 // pred_fallthru
    _
  // Predicated region
  $region10: #{conv_stem_forward.3} parent=0 // pred_check
    _
  $region11: #{conv_stem_forward.3} parent=0 // pred_check_branch
    %16 = sbr.rel (0) target = $region13
  $region12: #{conv_stem_forward.3} parent=0 // pred_region
    _
  $region13: #{conv_stem_forward.3} parent=0 // pred_fallthru
    _
  // Predicated region
  $region14: #{conv_stem_forward.3} parent=0 // pred_check
    _
  $region15: #{conv_stem_forward.3} parent=0 // pred_check_branch
    %18 = sbr.rel (0) target = $region17
  $region16: #{conv_stem_forward.3} parent=0 // pred_region
    _
  $region17: #{conv_stem_forward.3} parent=0 // pred_fallthru
    _
  // Predicated region
  $region18: #{conv_stem_forward.3} parent=0 // pred_check
    _
  $region19: #{conv_stem_forward.3} parent=0 // pred_check_branch
    %20 = sbr.rel (0) target = $region21
  $region20: #{conv_stem_forward.3} parent=0 // pred_region
    _
  $region21: #{conv_stem_forward.3} parent=0 // pred_fallthru
    _
  // Predicated region
  $region22: #{conv_stem_forward.3} parent=0 // pred_check
    _
  $region23: #{conv_stem_forward.3} parent=0 // pred_check_branch
    %22 = sbr.rel (0) target = $region25
  $region24: #{conv_stem_forward.3} parent=0 // pred_region
    _
  $region25: #{conv_stem_forward.3} parent=0 // pred_fallthru
    _
  %v24 = vld [vmem:[%s4] sm:$0xf]
  %v25 = vld [vmem:[%s4 + $0x4] sm:$0x3]
  %v26 = vld [vmem:[%s0] sm:$0xf]
  %v27 = vld [vmem:[%s0 + $0x4] sm:$0xf]
  %v28 = vld [vmem:[%s0 + $0x8] sm:$0xf]
  %v29 = vld [vmem:[%s0 + $0xc] sm:$0xf]
  %v30 = vld [vmem:[%s0 + $0x10] sm:$0xf]
  %v31 = vld [vmem:[%s0 + $0x14] sm:$0xf]
  %v32 = vld [vmem:[%s0 + $0x18] sm:$0xf]
  %v33 = vld [vmem:[%s0 + $0x1c] sm:$0xf]
  %v34 = vld [vmem:[%s0 + $0x20] sm:$0xf]
  %v35 = vld [vmem:[%s0 + $0x24] sm:$0xf]
  %v36 = vld [vmem:[%s0 + $0x28] sm:$0xf]
  %v37 = vld [vmem:[%s0 + $0x2c] sm:$0xf]
  %v38 = vld [vmem:[%s0 + $0x30] sm:$0xf]
  %v39 = vld [vmem:[%s0 + $0x34] sm:$0xf]
  %v40 = vld [vmem:[%s0 + $0x38] sm:$0xf]
  %v41 = vld [vmem:[%s0 + $0x3c] sm:$0xf]
  %v58 = vunpack.c.l.b16 %v26
  %v59 = vunpack.c.l.b16 %v27
  %v60 = vunpack.c.l.b16 %v28
  %v61 = vunpack.c.l.b16 %v29
  %v62 = vunpack.c.l.b16 %v30
  %v63 = vunpack.c.l.b16 %v31
  %v64 = vunpack.c.l.b16 %v32
  %v65 = vunpack.c.l.b16 %v33
  %v66 = vunpack.c.l.b16 %v34
  %v67 = vunpack.c.l.b16 %v35
  %v68 = vunpack.c.l.b16 %v36
  %v69 = vunpack.c.l.b16 %v37
  %v70 = vunpack.c.l.b16 %v38
  %v71 = vunpack.c.l.b16 %v39
  %v72 = vunpack.c.l.b16 %v40
  %v73 = vunpack.c.l.b16 %v41
  %v74 = vpack.c.b16 %v59, %v58
  %v75 = vpack.c.b16 %v61, %v60
  %v76 = vpack.c.b16 %v63, %v62
  %v77 = vpack.c.b16 %v65, %v64
  %v78 = vpack.c.b16 %v67, %v66
  %v79 = vpack.c.b16 %v69, %v68
  %v80 = vpack.c.b16 %v71, %v70
  %v81 = vpack.c.b16 %v73, %v72
  %v84 = vunpack.c.l.b16 %v24
  %v85 = vunpack.c.l.b16 %v25
  %v86 = vpack.c.b16 %v85, %v84
  %vm87 = vcmask 97280
  %v89 = vsel %vm87, %v74, 0
  %v92 = vsel %vm87, %v75, 0
  %v95 = vsel %vm87, %v76, 0
  %v98 = vsel %vm87, %v77, 0
  %v101 = vsel %vm87, %v78, 0
  %v104 = vsel %vm87, %v79, 0
  %v107 = vsel %vm87, %v80, 0
  %v110 = vsel %vm87, %v81, 0
  %vm112 = vcmask 1045504
  %v114 = vsel %vm112, %v86, 0
  %116 = vmatprep.subr.bf16.mxu0 0
  %117 = vmatpush1.bf16.msra.mxu0 %v114
  %118 = vmatprep.subr.bf16.mxu0 0
  %119 = vmatpush1.bf16.msra.mxu0 0
  %120 = vmatprep.subr.bf16.mxu0 0
  %121 = vmatpush1.bf16.msra.mxu0 0
  %122 = vmatprep.subr.bf16.mxu0 0
  %123 = vmatpush1.bf16.msra.mxu0 0
  %124 = vmatprep.subr.bf16.mxu0 0
  %125 = vmatpush1.bf16.msra.mxu0 0
  %126 = vmatprep.subr.bf16.mxu0 0
  %127 = vmatpush1.bf16.msra.mxu0 0
  %128 = vmatprep.subr.bf16.mxu0 0
  %129 = vmatpush1.bf16.msra.mxu0 0
  %130 = vmatprep.subr.bf16.mxu0 0
  %131 = vmatpush1.bf16.msra.mxu0 0
  %132 = vmatprep.subr.bf16.mxu0 0
  %133 = vmatpush1.bf16.msra.mxu0 0
  %134 = vmatprep.subr.bf16.mxu0 0
  %135 = vmatpush1.bf16.msra.mxu0 0
  %136 = vmatprep.subr.bf16.mxu0 0
  %137 = vmatpush1.bf16.msra.mxu0 0
  %138 = vmatprep.subr.bf16.mxu0 0
  %139 = vmatpush1.bf16.msra.mxu0 0
  %140 = vmatprep.subr.bf16.mxu0 0
  %141 = vmatpush1.bf16.msra.mxu0 0
  %142 = vmatprep.subr.bf16.mxu0 0
  %143 = vmatpush1.bf16.msra.mxu0 0
  %144 = vmatprep.subr.bf16.mxu0 0
  %145 = vmatpush1.bf16.msra.mxu0 0
  %146 = vmatprep.subr.bf16.mxu0 0
  %147 = vmatpush1.bf16.msra.mxu0 0
  %148 = vmatprep.mubr.bf16.mxu0 0
  %149 = vmatmul.mubr.bf16.gmra.mrb[0].mxu0 %v89
  %v150 = vpop.f32.mrb[0].mxu0
  %v151 = vadd.f32 0.0, %v150
  %v152 = vpop.f32.mrb[0].mxu0
  %v153 = vpop.f32.mrb[0].mxu0
  %v154 = vadd.f32 0.0, %v153
  %v155 = vpop.f32.mrb[0].mxu0
  %156 = vmatprep.mubr.bf16.mxu0 0
  %157 = vmatmul.mubr.bf16.gmra.mrb[0].mxu0 %v92
  %v158 = vpop.f32.mrb[0].mxu0
  %v159 = vadd.f32 0.0, %v158
  %v160 = vpop.f32.mrb[0].mxu0
  %v161 = vpop.f32.mrb[0].mxu0
  %v162 = vadd.f32 0.0, %v161
  %v163 = vpop.f32.mrb[0].mxu0
  %164 = vmatprep.mubr.bf16.mxu0 0
  %165 = vmatmul.mubr.bf16.gmra.mrb[0].mxu0 %v95
  %v166 = vpop.f32.mrb[0].mxu0
  %v167 = vadd.f32 0.0, %v166
  %v168 = vpop.f32.mrb[0].mxu0
  %v169 = vpop.f32.mrb[0].mxu0
  %v170 = vadd.f32 0.0, %v169
  %v171 = vpop.f32.mrb[0].mxu0
  %172 = vmatprep.mubr.bf16.mxu0 0
  %173 = vmatmul.mubr.bf16.gmra.mrb[0].mxu0 %v98
  %v174 = vpop.f32.mrb[0].mxu0
  %v175 = vadd.f32 0.0, %v174
  %v176 = vpop.f32.mrb[0].mxu0
  %v177 = vpop.f32.mrb[0].mxu0
  %v178 = vadd.f32 0.0, %v177
  %v179 = vpop.f32.mrb[0].mxu0
  %180 = vmatprep.mubr.bf16.mxu0 0
  %181 = vmatmul.mubr.bf16.gmra.mrb[0].mxu0 %v101
  %v182 = vpop.f32.mrb[0].mxu0
  %v183 = vadd.f32 0.0, %v182
  %v184 = vpop.f32.mrb[0].mxu0
  %v185 = vpop.f32.mrb[0].mxu0
  %v186 = vadd.f32 0.0, %v185
  %v187 = vpop.f32.mrb[0].mxu0
  %188 = vmatprep.mubr.bf16.mxu0 0
  %189 = vmatmul.mubr.bf16.gmra.mrb[0].mxu0 %v104
  %v190 = vpop.f32.mrb[0].mxu0
  %v191 = vadd.f32 0.0, %v190
  %v192 = vpop.f32.mrb[0].mxu0
  %v193 = vpop.f32.mrb[0].mxu0
  %v194 = vadd.f32 0.0, %v193
  %v195 = vpop.f32.mrb[0].mxu0
  %196 = vmatprep.mubr.bf16.mxu0 0
  %197 = vmatmul.mubr.bf16.gmra.mrb[0].mxu0 %v107
  %v198 = vpop.f32.mrb[0].mxu0
  %v199 = vadd.f32 0.0, %v198
  %v200 = vpop.f32.mrb[0].mxu0
  %v201 = vpop.f32.mrb[0].mxu0
  %v202 = vadd.f32 0.0, %v201
  %v203 = vpop.f32.mrb[0].mxu0
  %204 = vmatprep.mubr.bf16.mxu0 0
  %205 = vmatmul.mubr.bf16.gmra.mrb[0].mxu0 %v110
  %v206 = vpop.f32.mrb[0].mxu0
  %v207 = vadd.f32 0.0, %v206
  %v208 = vpop.f32.mrb[0].mxu0
  %v209 = vpop.f32.mrb[0].mxu0
  %v210 = vadd.f32 0.0, %v209
  %v211 = vpop.f32.mrb[0].mxu0
  %212 = vdwg.mxu0
  %v213 = vld [vmem:[%s1] sm:$0xf]
  %v214 = vld [vmem:[%s1 + $0x4] sm:$0xf]
  %v215 = vld [vmem:[%s1 + $0x8] sm:$0xf]
  %v216 = vld [vmem:[%s1 + $0xc] sm:$0xf]
  %v217 = vld [vmem:[%s1 + $0x10] sm:$0xf]
  %v218 = vld [vmem:[%s1 + $0x14] sm:$0xf]
  %v219 = vld [vmem:[%s1 + $0x18] sm:$0xf]
  %v220 = vld [vmem:[%s1 + $0x1c] sm:$0xf]
  %v221 = vld [vmem:[%s1 + $0x20] sm:$0xf]
  %v222 = vld [vmem:[%s1 + $0x24] sm:$0xf]
  %v223 = vld [vmem:[%s1 + $0x28] sm:$0xf]
  %v224 = vld [vmem:[%s1 + $0x2c] sm:$0xf]
  %v225 = vld [vmem:[%s1 + $0x30] sm:$0xf]
  %v226 = vld [vmem:[%s1 + $0x34] sm:$0xf]
  %v227 = vld [vmem:[%s1 + $0x38] sm:$0xf]
  %v228 = vld [vmem:[%s1 + $0x3c] sm:$0xf]
  %v245 = vunpack.c.l.b16 %v213
  %v246 = vunpack.c.l.b16 %v214
  %v247 = vunpack.c.l.b16 %v215
  %v248 = vunpack.c.l.b16 %v216
  %v249 = vunpack.c.l.b16 %v217
  %v250 = vunpack.c.l.b16 %v218
  %v251 = vunpack.c.l.b16 %v219
  %v252 = vunpack.c.l.b16 %v220
  %v253 = vunpack.c.l.b16 %v221
  %v254 = vunpack.c.l.b16 %v222
  %v255 = vunpack.c.l.b16 %v223
  %v256 = vunpack.c.l.b16 %v224
  %v257 = vunpack.c.l.b16 %v225
  %v258 = vunpack.c.l.b16 %v226
  %v259 = vunpack.c.l.b16 %v227
  %v260 = vunpack.c.l.b16 %v228
  %v261 = vpack.c.b16 %v246, %v245
  %v262 = vpack.c.b16 %v248, %v247
  %v263 = vpack.c.b16 %v250, %v249
  %v264 = vpack.c.b16 %v252, %v251
  %v265 = vpack.c.b16 %v254, %v253
  %v266 = vpack.c.b16 %v256, %v255
  %v267 = vpack.c.b16 %v258, %v257
  %v268 = vpack.c.b16 %v260, %v259
  %v270 = vsel %vm87, %v261, 0
  %v273 = vsel %vm87, %v262, 0
  %v276 = vsel %vm87, %v263, 0
  %v279 = vsel %vm87, %v264, 0
  %v282 = vsel %vm87, %v265, 0
  %v285 = vsel %vm87, %v266, 0
  %v288 = vsel %vm87, %v267, 0
  %v291 = vsel %vm87, %v268, 0
  %293 = vmatprep.subr.bf16.mxu0 0
  %294 = vmatpush1.bf16.msra.mxu0 %v114
  %295 = vmatprep.subr.bf16.mxu0 0
  %296 = vmatpush1.bf16.msra.mxu0 0
  %297 = vmatprep.subr.bf16.mxu0 0
  %298 = vmatpush1.bf16.msra.mxu0 0
  %299 = vmatprep.subr.bf16.mxu0 0
  %300 = vmatpush1.bf16.msra.mxu0 0
  %301 = vmatprep.subr.bf16.mxu0 0
  %302 = vmatpush1.bf16.msra.mxu0 0
  %303 = vmatprep.subr.bf16.mxu0 0
  %304 = vmatpush1.bf16.msra.mxu0 0
  %305 = vmatprep.subr.bf16.mxu0 0
  %306 = vmatpush1.bf16.msra.mxu0 0
  %307 = vmatprep.subr.bf16.mxu0 0
  %308 = vmatpush1.bf16.msra.mxu0 0
  %309 = vmatprep.subr.bf16.mxu0 0
  %310 = vmatpush1.bf16.msra.mxu0 0
  %311 = vmatprep.subr.bf16.mxu0 0
  %312 = vmatpush1.bf16.msra.mxu0 0
  %313 = vmatprep.subr.bf16.mxu0 0
  %314 = vmatpush1.bf16.msra.mxu0 0
  %315 = vmatprep.subr.bf16.mxu0 0
  %316 = vmatpush1.bf16.msra.mxu0 0
  %317 = vmatprep.subr.bf16.mxu0 0
  %318 = vmatpush1.bf16.msra.mxu0 0
  %319 = vmatprep.subr.bf16.mxu0 0
  %320 = vmatpush1.bf16.msra.mxu0 0
  %321 = vmatprep.subr.bf16.mxu0 0
  %322 = vmatpush1.bf16.msra.mxu0 0
  %323 = vmatprep.subr.bf16.mxu0 0
  %324 = vmatpush1.bf16.msra.mxu0 0
  %325 = vmatprep.mubr.bf16.mxu0 0
  %326 = vmatmul.mubr.bf16.gmra.mrb[0].mxu0 %v270
  %v327 = vpop.f32.mrb[0].mxu0
  %v328 = vadd.f32 0.0, %v327
  %v329 = vpop.f32.mrb[0].mxu0
  %v330 = vpop.f32.mrb[0].mxu0
  %v331 = vadd.f32 0.0, %v330
  %v332 = vpop.f32.mrb[0].mxu0
  %333 = vmatprep.mubr.bf16.mxu0 0
  %334 = vmatmul.mubr.bf16.gmra.mrb[0].mxu0 %v273
  %v335 = vpop.f32.mrb[0].mxu0
  %v336 = vadd.f32 0.0, %v335
  %v337 = vpop.f32.mrb[0].mxu0
  %v338 = vpop.f32.mrb[0].mxu0
  %v339 = vadd.f32 0.0, %v338
  %v340 = vpop.f32.mrb[0].mxu0
  %341 = vmatprep.mubr.bf16.mxu0 0
  %342 = vmatmul.mubr.bf16.gmra.mrb[0].mxu0 %v276
  %v343 = vpop.f32.mrb[0].mxu0
  %v344 = vadd.f32 0.0, %v343
  %v345 = vpop.f32.mrb[0].mxu0
  %v346 = vpop.f32.mrb[0].mxu0
  %v347 = vadd.f32 0.0, %v346
  %v348 = vpop.f32.mrb[0].mxu0
  %349 = vmatprep.mubr.bf16.mxu0 0
  %350 = vmatmul.mubr.bf16.gmra.mrb[0].mxu0 %v279
  %v351 = vpop.f32.mrb[0].mxu0
  %v352 = vadd.f32 0.0, %v351
  %v353 = vpop.f32.mrb[0].mxu0
  %v354 = vpop.f32.mrb[0].mxu0
  %v355 = vadd.f32 0.0, %v354
  %v356 = vpop.f32.mrb[0].mxu0
  %357 = vmatprep.mubr.bf16.mxu0 0
  %358 = vmatmul.mubr.bf16.gmra.mrb[0].mxu0 %v282
  %v359 = vpop.f32.mrb[0].mxu0
  %v360 = vadd.f32 0.0, %v359
  %v361 = vpop.f32.mrb[0].mxu0
  %v362 = vpop.f32.mrb[0].mxu0
  %v363 = vadd.f32 0.0, %v362
  %v364 = vpop.f32.mrb[0].mxu0
  %365 = vmatprep.mubr.bf16.mxu0 0
  %366 = vmatmul.mubr.bf16.gmra.mrb[0].mxu0 %v285
  %v367 = vpop.f32.mrb[0].mxu0
  %v368 = vadd.f32 0.0, %v367
  %v369 = vpop.f32.mrb[0].mxu0
  %v370 = vpop.f32.mrb[0].mxu0
  %v371 = vadd.f32 0.0, %v370
  %v372 = vpop.f32.mrb[0].mxu0
  %373 = vmatprep.mubr.bf16.mxu0 0
  %374 = vmatmul.mubr.bf16.gmra.mrb[0].mxu0 %v288
  %v375 = vpop.f32.mrb[0].mxu0
  %v376 = vadd.f32 0.0, %v375
  %v377 = vpop.f32.mrb[0].mxu0
  %v378 = vpop.f32.mrb[0].mxu0
  %v379 = vadd.f32 0.0, %v378
  %v380 = vpop.f32.mrb[0].mxu0
  %381 = vmatprep.mubr.bf16.mxu0 0
  %382 = vmatmul.mubr.bf16.gmra.mrb[0].mxu0 %v291
  %v383 = vpop.f32.mrb[0].mxu0
  %v384 = vadd.f32 0.0, %v383
  %v385 = vpop.f32.mrb[0].mxu0
  %v386 = vpop.f32.mrb[0].mxu0
  %v387 = vadd.f32 0.0, %v386
  %v388 = vpop.f32.mrb[0].mxu0
  %389 = vdwg.mxu0
  %v390 = vmax.f32 %v151, %v328
  %v391 = vmax.f32 %v154, %v331
  %v392 = vmax.f32 %v159, %v336
  %v393 = vmax.f32 %v162, %v339
  %v394 = vmax.f32 %v167, %v344
  %v395 = vmax.f32 %v170, %v347
  %v396 = vmax.f32 %v175, %v352
  %v397 = vmax.f32 %v178, %v355
  %v398 = vmax.f32 %v183, %v360
  %v399 = vmax.f32 %v186, %v363
  %v400 = vmax.f32 %v191, %v368
  %v401 = vmax.f32 %v194, %v371
  %v402 = vmax.f32 %v199, %v376
  %v403 = vmax.f32 %v202, %v379
  %v404 = vmax.f32 %v207, %v384
  %v405 = vmax.f32 %v210, %v387
  %v406 = vld [vmem:[%s2] sm:$0xf]
  %v407 = vld [vmem:[%s2 + $0x4] sm:$0xf]
  %v408 = vld [vmem:[%s2 + $0x8] sm:$0xf]
  %v409 = vld [vmem:[%s2 + $0xc] sm:$0xf]
  %v410 = vld [vmem:[%s2 + $0x10] sm:$0xf]
  %v411 = vld [vmem:[%s2 + $0x14] sm:$0xf]
  %v412 = vld [vmem:[%s2 + $0x18] sm:$0xf]
  %v413 = vld [vmem:[%s2 + $0x1c] sm:$0xf]
  %v414 = vld [vmem:[%s2 + $0x20] sm:$0xf]
  %v415 = vld [vmem:[%s2 + $0x24] sm:$0xf]
  %v416 = vld [vmem:[%s2 + $0x28] sm:$0xf]
  %v417 = vld [vmem:[%s2 + $0x2c] sm:$0xf]
  %v418 = vld [vmem:[%s2 + $0x30] sm:$0xf]
  %v419 = vld [vmem:[%s2 + $0x34] sm:$0xf]
  %v420 = vld [vmem:[%s2 + $0x38] sm:$0xf]
  %v421 = vld [vmem:[%s2 + $0x3c] sm:$0xf]
  %v438 = vunpack.c.l.b16 %v406
  %v439 = vunpack.c.l.b16 %v407
  %v440 = vunpack.c.l.b16 %v408
  %v441 = vunpack.c.l.b16 %v409
  %v442 = vunpack.c.l.b16 %v410
  %v443 = vunpack.c.l.b16 %v411
  %v444 = vunpack.c.l.b16 %v412
  %v445 = vunpack.c.l.b16 %v413
  %v446 = vunpack.c.l.b16 %v414
  %v447 = vunpack.c.l.b16 %v415
  %v448 = vunpack.c.l.b16 %v416
  %v449 = vunpack.c.l.b16 %v417
  %v450 = vunpack.c.l.b16 %v418
  %v451 = vunpack.c.l.b16 %v419
  %v452 = vunpack.c.l.b16 %v420
  %v453 = vunpack.c.l.b16 %v421
  %v454 = vpack.c.b16 %v439, %v438
  %v455 = vpack.c.b16 %v441, %v440
  %v456 = vpack.c.b16 %v443, %v442
  %v457 = vpack.c.b16 %v445, %v444
  %v458 = vpack.c.b16 %v447, %v446
  %v459 = vpack.c.b16 %v449, %v448
  %v460 = vpack.c.b16 %v451, %v450
  %v461 = vpack.c.b16 %v453, %v452
  %v463 = vsel %vm87, %v454, 0
  %v466 = vsel %vm87, %v455, 0
  %v469 = vsel %vm87, %v456, 0
  %v472 = vsel %vm87, %v457, 0
  %v475 = vsel %vm87, %v458, 0
  %v478 = vsel %vm87, %v459, 0
  %v481 = vsel %vm87, %v460, 0
  %v484 = vsel %vm87, %v461, 0
  %486 = vmatprep.subr.bf16.mxu0 0
  %487 = vmatpush1.bf16.msra.mxu0 %v114
  %488 = vmatprep.subr.bf16.mxu0 0
  %489 = vmatpush1.bf16.msra.mxu0 0
  %490 = vmatprep.subr.bf16.mxu0 0
  %491 = vmatpush1.bf16.msra.mxu0 0
  %492 = vmatprep.subr.bf16.mxu0 0
  %493 = vmatpush1.bf16.msra.mxu0 0
  %494 = vmatprep.subr.bf16.mxu0 0
  %495 = vmatpush1.bf16.msra.mxu0 0
  %496 = vmatprep.subr.bf16.mxu0 0
  %497 = vmatpush1.bf16.msra.mxu0 0
  %498 = vmatprep.subr.bf16.mxu0 0
  %499 = vmatpush1.bf16.msra.mxu0 0
  %500 = vmatprep.subr.bf16.mxu0 0
  %501 = vmatpush1.bf16.msra.mxu0 0
  %502 = vmatprep.subr.bf16.mxu0 0
  %503 = vmatpush1.bf16.msra.mxu0 0
  %504 = vmatprep.subr.bf16.mxu0 0
  %505 = vmatpush1.bf16.msra.mxu0 0
  %506 = vmatprep.subr.bf16.mxu0 0
  %507 = vmatpush1.bf16.msra.mxu0 0
  %508 = vmatprep.subr.bf16.mxu0 0
  %509 = vmatpush1.bf16.msra.mxu0 0
  %510 = vmatprep.subr.bf16.mxu0 0
  %511 = vmatpush1.bf16.msra.mxu0 0
  %512 = vmatprep.subr.bf16.mxu0 0
  %513 = vmatpush1.bf16.msra.mxu0 0
  %514 = vmatprep.subr.bf16.mxu0 0
  %515 = vmatpush1.bf16.msra.mxu0 0
  %516 = vmatprep.subr.bf16.mxu0 0
  %517 = vmatpush1.bf16.msra.mxu0 0
  %518 = vmatprep.mubr.bf16.mxu0 0
  %519 = vmatmul.mubr.bf16.gmra.mrb[0].mxu0 %v463
  %v520 = vpop.f32.mrb[0].mxu0
  %v521 = vadd.f32 0.0, %v520
  %v522 = vpop.f32.mrb[0].mxu0
  %v523 = vpop.f32.mrb[0].mxu0
  %v524 = vadd.f32 0.0, %v523
  %v525 = vpop.f32.mrb[0].mxu0
  %526 = vmatprep.mubr.bf16.mxu0 0
  %527 = vmatmul.mubr.bf16.gmra.mrb[0].mxu0 %v466
  %v528 = vpop.f32.mrb[0].mxu0
  %v529 = vadd.f32 0.0, %v528
  %v530 = vpop.f32.mrb[0].mxu0
  %v531 = vpop.f32.mrb[0].mxu0
  %v532 = vadd.f32 0.0, %v531
  %v533 = vpop.f32.mrb[0].mxu0
  %534 = vmatprep.mubr.bf16.mxu0 0
  %535 = vmatmul.mubr.bf16.gmra.mrb[0].mxu0 %v469
  %v536 = vpop.f32.mrb[0].mxu0
  %v537 = vadd.f32 0.0, %v536
  %v538 = vpop.f32.mrb[0].mxu0
  %v539 = vpop.f32.mrb[0].mxu0
  %v540 = vadd.f32 0.0, %v539
  %v541 = vpop.f32.mrb[0].mxu0
  %542 = vmatprep.mubr.bf16.mxu0 0
  %543 = vmatmul.mubr.bf16.gmra.mrb[0].mxu0 %v472
  %v544 = vpop.f32.mrb[0].mxu0
  %v545 = vadd.f32 0.0, %v544
  %v546 = vpop.f32.mrb[0].mxu0
  %v547 = vpop.f32.mrb[0].mxu0
  %v548 = vadd.f32 0.0, %v547
  %v549 = vpop.f32.mrb[0].mxu0
  %550 = vmatprep.mubr.bf16.mxu0 0
  %551 = vmatmul.mubr.bf16.gmra.mrb[0].mxu0 %v475
  %v552 = vpop.f32.mrb[0].mxu0
  %v553 = vadd.f32 0.0, %v552
  %v554 = vpop.f32.mrb[0].mxu0
  %v555 = vpop.f32.mrb[0].mxu0
  %v556 = vadd.f32 0.0, %v555
  %v557 = vpop.f32.mrb[0].mxu0
  %558 = vmatprep.mubr.bf16.mxu0 0
  %559 = vmatmul.mubr.bf16.gmra.mrb[0].mxu0 %v478
  %v560 = vpop.f32.mrb[0].mxu0
  %v561 = vadd.f32 0.0, %v560
  %v562 = vpop.f32.mrb[0].mxu0
  %v563 = vpop.f32.mrb[0].mxu0
  %v564 = vadd.f32 0.0, %v563
  %v565 = vpop.f32.mrb[0].mxu0
  %566 = vmatprep.mubr.bf16.mxu0 0
  %567 = vmatmul.mubr.bf16.gmra.mrb[0].mxu0 %v481
  %v568 = vpop.f32.mrb[0].mxu0
  %v569 = vadd.f32 0.0, %v568
  %v570 = vpop.f32.mrb[0].mxu0
  %v571 = vpop.f32.mrb[0].mxu0
  %v572 = vadd.f32 0.0, %v571
  %v573 = vpop.f32.mrb[0].mxu0
  %574 = vmatprep.mubr.bf16.mxu0 0
  %575 = vmatmul.mubr.bf16.gmra.mrb[0].mxu0 %v484
  %v576 = vpop.f32.mrb[0].mxu0
  %v577 = vadd.f32 0.0, %v576
  %v578 = vpop.f32.mrb[0].mxu0
  %v579 = vpop.f32.mrb[0].mxu0
  %v580 = vadd.f32 0.0, %v579
  %v581 = vpop.f32.mrb[0].mxu0
  %582 = vdwg.mxu0
  %v583 = vld [vmem:[%s3] sm:$0xf]
  %v584 = vld [vmem:[%s3 + $0x4] sm:$0xf]
  %v585 = vld [vmem:[%s3 + $0x8] sm:$0xf]
  %v586 = vld [vmem:[%s3 + $0xc] sm:$0xf]
  %v587 = vld [vmem:[%s3 + $0x10] sm:$0xf]
  %v588 = vld [vmem:[%s3 + $0x14] sm:$0xf]
  %v589 = vld [vmem:[%s3 + $0x18] sm:$0xf]
  %v590 = vld [vmem:[%s3 + $0x1c] sm:$0xf]
  %v591 = vld [vmem:[%s3 + $0x20] sm:$0xf]
  %v592 = vld [vmem:[%s3 + $0x24] sm:$0xf]
  %v593 = vld [vmem:[%s3 + $0x28] sm:$0xf]
  %v594 = vld [vmem:[%s3 + $0x2c] sm:$0xf]
  %v595 = vld [vmem:[%s3 + $0x30] sm:$0xf]
  %v596 = vld [vmem:[%s3 + $0x34] sm:$0xf]
  %v597 = vld [vmem:[%s3 + $0x38] sm:$0xf]
  %v598 = vld [vmem:[%s3 + $0x3c] sm:$0xf]
  %v615 = vunpack.c.l.b16 %v583
  %v616 = vunpack.c.l.b16 %v584
  %v617 = vunpack.c.l.b16 %v585
  %v618 = vunpack.c.l.b16 %v586
  %v619 = vunpack.c.l.b16 %v587
  %v620 = vunpack.c.l.b16 %v588
  %v621 = vunpack.c.l.b16 %v589
  %v622 = vunpack.c.l.b16 %v590
  %v623 = vunpack.c.l.b16 %v591
  %v624 = vunpack.c.l.b16 %v592
  %v625 = vunpack.c.l.b16 %v593
  %v626 = vunpack.c.l.b16 %v594
  %v627 = vunpack.c.l.b16 %v595
  %v628 = vunpack.c.l.b16 %v596
  %v629 = vunpack.c.l.b16 %v597
  %v630 = vunpack.c.l.b16 %v598
  %v631 = vpack.c.b16 %v616, %v615
  %v632 = vpack.c.b16 %v618, %v617
  %v633 = vpack.c.b16 %v620, %v619
  %v634 = vpack.c.b16 %v622, %v621
  %v635 = vpack.c.b16 %v624, %v623
  %v636 = vpack.c.b16 %v626, %v625
  %v637 = vpack.c.b16 %v628, %v627
  %v638 = vpack.c.b16 %v630, %v629
  %v640 = vsel %vm87, %v631, 0
  %v643 = vsel %vm87, %v632, 0
  %v646 = vsel %vm87, %v633, 0
  %v649 = vsel %vm87, %v634, 0
  %v652 = vsel %vm87, %v635, 0
  %v655 = vsel %vm87, %v636, 0
  %v658 = vsel %vm87, %v637, 0
  %v661 = vsel %vm87, %v638, 0
  %663 = vmatprep.subr.bf16.mxu0 0
  %664 = vmatpush1.bf16.msra.mxu0 %v114
  %665 = vmatprep.subr.bf16.mxu0 0
  %666 = vmatpush1.bf16.msra.mxu0 0
  %667 = vmatprep.subr.bf16.mxu0 0
  %668 = vmatpush1.bf16.msra.mxu0 0
  %669 = vmatprep.subr.bf16.mxu0 0
  %670 = vmatpush1.bf16.msra.mxu0 0
  %671 = vmatprep.subr.bf16.mxu0 0
  %672 = vmatpush1.bf16.msra.mxu0 0
  %673 = vmatprep.subr.bf16.mxu0 0
  %674 = vmatpush1.bf16.msra.mxu0 0
  %675 = vmatprep.subr.bf16.mxu0 0
  %676 = vmatpush1.bf16.msra.mxu0 0
  %677 = vmatprep.subr.bf16.mxu0 0
  %678 = vmatpush1.bf16.msra.mxu0 0
  %679 = vmatprep.subr.bf16.mxu0 0
  %680 = vmatpush1.bf16.msra.mxu0 0
  %681 = vmatprep.subr.bf16.mxu0 0
  %682 = vmatpush1.bf16.msra.mxu0 0
  %683 = vmatprep.subr.bf16.mxu0 0
  %684 = vmatpush1.bf16.msra.mxu0 0
  %685 = vmatprep.subr.bf16.mxu0 0
  %686 = vmatpush1.bf16.msra.mxu0 0
  %687 = vmatprep.subr.bf16.mxu0 0
  %688 = vmatpush1.bf16.msra.mxu0 0
  %689 = vmatprep.subr.bf16.mxu0 0
  %690 = vmatpush1.bf16.msra.mxu0 0
  %691 = vmatprep.subr.bf16.mxu0 0
  %692 = vmatpush1.bf16.msra.mxu0 0
  %693 = vmatprep.subr.bf16.mxu0 0
  %694 = vmatpush1.bf16.msra.mxu0 0
  %695 = vmatprep.mubr.bf16.mxu0 0
  %696 = vmatmul.mubr.bf16.gmra.mrb[0].mxu0 %v640
  %v697 = vpop.f32.mrb[0].mxu0
  %v698 = vadd.f32 0.0, %v697
  %v699 = vpop.f32.mrb[0].mxu0
  %v700 = vpop.f32.mrb[0].mxu0
  %v701 = vadd.f32 0.0, %v700
  %v702 = vpop.f32.mrb[0].mxu0
  %703 = vmatprep.mubr.bf16.mxu0 0
  %704 = vmatmul.mubr.bf16.gmra.mrb[0].mxu0 %v643
  %v705 = vpop.f32.mrb[0].mxu0
  %v706 = vadd.f32 0.0, %v705
  %v707 = vpop.f32.mrb[0].mxu0
  %v708 = vpop.f32.mrb[0].mxu0
  %v709 = vadd.f32 0.0, %v708
  %v710 = vpop.f32.mrb[0].mxu0
  %711 = vmatprep.mubr.bf16.mxu0 0
  %712 = vmatmul.mubr.bf16.gmra.mrb[0].mxu0 %v646
  %v713 = vpop.f32.mrb[0].mxu0
  %v714 = vadd.f32 0.0, %v713
  %v715 = vpop.f32.mrb[0].mxu0
  %v716 = vpop.f32.mrb[0].mxu0
  %v717 = vadd.f32 0.0, %v716
  %v718 = vpop.f32.mrb[0].mxu0
  %719 = vmatprep.mubr.bf16.mxu0 0
  %720 = vmatmul.mubr.bf16.gmra.mrb[0].mxu0 %v649
  %v721 = vpop.f32.mrb[0].mxu0
  %v722 = vadd.f32 0.0, %v721
  %v723 = vpop.f32.mrb[0].mxu0
  %v724 = vpop.f32.mrb[0].mxu0
  %v725 = vadd.f32 0.0, %v724
  %v726 = vpop.f32.mrb[0].mxu0
  %727 = vmatprep.mubr.bf16.mxu0 0
  %728 = vmatmul.mubr.bf16.gmra.mrb[0].mxu0 %v652
  %v729 = vpop.f32.mrb[0].mxu0
  %v730 = vadd.f32 0.0, %v729
  %v731 = vpop.f32.mrb[0].mxu0
  %v732 = vpop.f32.mrb[0].mxu0
  %v733 = vadd.f32 0.0, %v732
  %v734 = vpop.f32.mrb[0].mxu0
  %735 = vmatprep.mubr.bf16.mxu0 0
  %736 = vmatmul.mubr.bf16.gmra.mrb[0].mxu0 %v655
  %v737 = vpop.f32.mrb[0].mxu0
  %v738 = vadd.f32 0.0, %v737
  %v739 = vpop.f32.mrb[0].mxu0
  %v740 = vpop.f32.mrb[0].mxu0
  %v741 = vadd.f32 0.0, %v740
  %v742 = vpop.f32.mrb[0].mxu0
  %743 = vmatprep.mubr.bf16.mxu0 0
  %744 = vmatmul.mubr.bf16.gmra.mrb[0].mxu0 %v658
  %v745 = vpop.f32.mrb[0].mxu0
  %v746 = vadd.f32 0.0, %v745
  %v747 = vpop.f32.mrb[0].mxu0
  %v748 = vpop.f32.mrb[0].mxu0
  %v749 = vadd.f32 0.0, %v748
  %v750 = vpop.f32.mrb[0].mxu0
  %751 = vmatprep.mubr.bf16.mxu0 0
  %752 = vmatmul.mubr.bf16.gmra.mrb[0].mxu0 %v661
  %v753 = vpop.f32.mrb[0].mxu0
  %v754 = vadd.f32 0.0, %v753
  %v755 = vpop.f32.mrb[0].mxu0
  %v756 = vpop.f32.mrb[0].mxu0
  %v757 = vadd.f32 0.0, %v756
  %v758 = vpop.f32.mrb[0].mxu0
  %759 = vdwg.mxu0
  %v760 = vmax.f32 %v521, %v698
  %v761 = vmax.f32 %v524, %v701
  %v762 = vmax.f32 %v529, %v706
  %v763 = vmax.f32 %v532, %v709
  %v764 = vmax.f32 %v537, %v714
  %v765 = vmax.f32 %v540, %v717
  %v766 = vmax.f32 %v545, %v722
  %v767 = vmax.f32 %v548, %v725
  %v768 = vmax.f32 %v553, %v730
  %v769 = vmax.f32 %v556, %v733
  %v770 = vmax.f32 %v561, %v738
  %v771 = vmax.f32 %v564, %v741
  %v772 = vmax.f32 %v569, %v746
  %v773 = vmax.f32 %v572, %v749
  %v774 = vmax.f32 %v577, %v754
  %v775 = vmax.f32 %v580, %v757
  %v776 = vmax.f32 %v390, %v760
  %v777 = vmax.f32 %v391, %v761
  %v778 = vmax.f32 %v392, %v762
  %v779 = vmax.f32 %v393, %v763
  %v780 = vmax.f32 %v394, %v764
  %v781 = vmax.f32 %v395, %v765
  %v782 = vmax.f32 %v396, %v766
  %v783 = vmax.f32 %v397, %v767
  %v784 = vmax.f32 %v398, %v768
  %v785 = vmax.f32 %v399, %v769
  %v786 = vmax.f32 %v400, %v770
  %v787 = vmax.f32 %v401, %v771
  %v788 = vmax.f32 %v402, %v772
  %v789 = vmax.f32 %v403, %v773
  %v790 = vmax.f32 %v404, %v774
  %v791 = vmax.f32 %v405, %v775
  %v792 = vld [vmem:[%s5] sm:$0x1]
  %v794 = vlaneseq
  %v795 = vshrl.u32 %v794, 7
  %v796 = vsub.s32 0, %v795
  %v797 = vrot.slane %v792, %v796
  %v799 = vadd.f32 %v776, %v797
  %v800 = vadd.f32 %v777, %v797
  %v801 = vadd.f32 %v778, %v797
  %v802 = vadd.f32 %v779, %v797
  %v803 = vadd.f32 %v780, %v797
  %v804 = vadd.f32 %v781, %v797
  %v805 = vadd.f32 %v782, %v797
  %v806 = vadd.f32 %v783, %v797
  %v807 = vadd.f32 %v784, %v797
  %v808 = vadd.f32 %v785, %v797
  %v809 = vadd.f32 %v786, %v797
  %v810 = vadd.f32 %v787, %v797
  %v811 = vadd.f32 %v788, %v797
  %v812 = vadd.f32 %v789, %v797
  %v813 = vadd.f32 %v790, %v797
  %v814 = vadd.f32 %v791, %v797
  %v815 = vmax.f32 %v799, 0.0
  %v816 = vmax.f32 %v800, 0.0
  %v817 = vmax.f32 %v801, 0.0
  %v818 = vmax.f32 %v802, 0.0
  %v819 = vmax.f32 %v803, 0.0
  %v820 = vmax.f32 %v804, 0.0
  %v821 = vmax.f32 %v805, 0.0
  %v822 = vmax.f32 %v806, 0.0
  %v823 = vmax.f32 %v807, 0.0
  %v824 = vmax.f32 %v808, 0.0
  %v825 = vmax.f32 %v809, 0.0
  %v826 = vmax.f32 %v810, 0.0
  %v827 = vmax.f32 %v811, 0.0
  %v828 = vmax.f32 %v812, 0.0
  %v829 = vmax.f32 %v813, 0.0
  %v830 = vmax.f32 %v814, 0.0
  %vm831 = vcmask 261120
  %832 = vst.msk [vmem:[%s6] sm:$0xff] %vm831, %v815
  %833 = vst.msk [vmem:[%s6 + $0x8] sm:$0xff] %vm831, %v816
  %834 = vst.msk [vmem:[%s6 + $0x10] sm:$0xff] %vm831, %v817
  %835 = vst.msk [vmem:[%s6 + $0x18] sm:$0xff] %vm831, %v818
  %836 = vst.msk [vmem:[%s6 + $0x20] sm:$0xff] %vm831, %v819
  %837 = vst.msk [vmem:[%s6 + $0x28] sm:$0xff] %vm831, %v820
  %838 = vst.msk [vmem:[%s6 + $0x30] sm:$0xff] %vm831, %v821
  %839 = vst.msk [vmem:[%s6 + $0x38] sm:$0xff] %vm831, %v822
  %840 = vst.msk [vmem:[%s6 + $0x40] sm:$0xff] %vm831, %v823
  %841 = vst.msk [vmem:[%s6 + $0x48] sm:$0xff] %vm831, %v824
  %842 = vst.msk [vmem:[%s6 + $0x50] sm:$0xff] %vm831, %v825
  %843 = vst.msk [vmem:[%s6 + $0x58] sm:$0xff] %vm831, %v826
  %844 = vst.msk [vmem:[%s6 + $0x60] sm:$0xff] %vm831, %v827
  %845 = vst.msk [vmem:[%s6 + $0x68] sm:$0xff] %vm831, %v828
  %846 = vst.msk [vmem:[%s6 + $0x70] sm:$0xff] %vm831, %v829
  %847 = vst.msk [vmem:[%s6 + $0x78] sm:$0xff] %vm831, %v830
  // Predicated region
  $region26: #{conv_stem_forward.3} parent=0 // pred_check
    _
  $region27: #{conv_stem_forward.3} parent=0 // pred_check_branch
    %849 = sbr.rel (0) target = $region29
  $region28: #{conv_stem_forward.3} parent=0 // pred_region
    _
  $region29: #{conv_stem_forward.3} parent=0 // pred_fallthru
    _
  // Predicated region
  $region30: #{conv_stem_forward.3} parent=0 // pred_check
    _
  $region31: #{conv_stem_forward.3} parent=0 // pred_check_branch
    %851 = sbr.rel (0) target = $region33
  $region32: #{conv_stem_forward.3} parent=0 // pred_region
    _
  $region33: #{conv_stem_forward.3} parent=0 // pred_fallthru
    _

</llo_original>
